<compile_context>
chip_gen: v5e
topology: v5e:2x2
jax: 0.10.0
libtpu: 0.0.40
codegen_flags: <defaults>
</compile_context>

<pallas_src>
import functools

import jax
import jax.numpy as jnp
from jax.experimental import pallas as pl
from jax.experimental.pallas import tpu as pltpu


def _round_up(x, m):
    return (x + m - 1) // m * m


# Physical VMEM of the local TPU, queried once outside of jit tracing.
try:
    _VMEM_CAP = int(pltpu.get_tpu_info().vmem_capacity_bytes)
except Exception:  # conservative (v7x-sized) fallback
    _VMEM_CAP = 64 * 2**20


# ---------------------------------------------------------------------------
# Pallas kernel: KW-folded conv + folded-BN affine + ReLU
# ---------------------------------------------------------------------------
def _make_kernel(KH, th, w_out_pad, kwc):
    tm = th * w_out_pad

    def kernel(x_ref, w_ref, scale_ref, bias_ref, o_ref, acc_ref):
        # x_ref:     (Hp, w_out_pad, kwc) bf16 packed image (lane dim = KW*C)
        # w_ref:     (KH, kwc, tn)        bf16 conv weight, OC tile j
        # scale_ref: (1, tn)              f32 folded BN scale = gamma/sqrt(var+eps)
        # bias_ref:  (1, tn)              f32 folded bias = (conv_b-mean)*scale+beta
        # o_ref:     (tm, tn)
        # acc_ref:   (tm, tn)             f32 VMEM scratch accumulator
        hb = pl.program_id(2)              # innermost grid axis (H block)
        row0 = hb * th
        for kh in range(KH):               # unrolled at trace time: KH MXU dots
            xs = x_ref[pl.ds(row0 + kh, th), :, :].reshape(tm, kwc)
            d = jnp.dot(xs, w_ref[kh], preferred_element_type=jnp.float32)
            if kh == 0:
                acc_ref[...] = d           # overwrite: no zero-init, no carry
            else:
                acc_ref[...] += d
        y = acc_ref[...] * scale_ref[...] + bias_ref[...]
        o_ref[...] = jnp.maximum(y, 0.0).astype(o_ref.dtype)

    return kernel


# ---------------------------------------------------------------------------
# BasicConv2d forward: Conv2d(k, s=1, p, bias=True) + BN(eps=1e-3) + ReLU
# ---------------------------------------------------------------------------
@functools.partial(jax.jit, static_argnames=("kernel_size", "padding", "out_dtype"))
def basic_conv2d(x, conv_w, conv_b, bn_gamma, bn_beta, bn_mean, bn_var,
                 *, kernel_size=3, padding=1, out_dtype=None):
    N, C, H, W = x.shape
    OC = conv_w.shape[0]
    KH = KW = kernel_size
    p = padding
    eps = 1e-3
    out_dtype = x.dtype if out_dtype is None else jnp.dtype(out_dtype)

    H_out = H + 2 * p - KH + 1
    W_out = W + 2 * p - KW + 1
    KWC = KW * C

    # --- tiling ---------------------------------------------------------------
    OC_pad = _round_up(OC, 128)
    # TODO(synk): on v5e (4x128^2 MXU, single store slot) prefer tn=128 always.
    tn = 256 if OC_pad % 256 == 0 else 128
    OCT = OC_pad // tn
    W_out_pad = _round_up(W_out, 16)             # bf16 sublane pack -> clean reshape
    tm_target = 256 if tn == 256 else 512        # keep f32 acc within vreg budget
    th = max(1, min(H_out, tm_target // W_out_pad))
    HB = -(-H_out // th)                         # cdiv
    H_out_pad = HB * th
    tm = th * W_out_pad
    M_pad = N * H_out_pad * W_out_pad
    Hp = H_out_pad + KH - 1                      # packed image height (halo incl.)

    # --- operand prep: fold KW into the lane / contraction dim -----------------
    x_nhwc = jnp.transpose(x, (0, 2, 3, 1)).astype(jnp.bfloat16)       # (N,H,W,C)
    Wp_raw = W_out_pad + KW - 1
    x_pad = jnp.pad(x_nhwc, ((0, 0), (p, Hp - H - p), (p, Wp_raw - W - p), (0, 0)))
    # x_packed[n, h, w, kw*C + c] = x_pad[n, h, w + kw, c]
    x_packed = jnp.concatenate(
        [x_pad[:, :, kw:kw + W_out_pad, :] for kw in range(KW)], axis=-1)

    # conv weight (OC, C, KH, KW) -> (KH, KW*C, OC_pad), matching lane order.
    w_r = jnp.transpose(conv_w, (2, 3, 1, 0)).reshape(KH, KWC, OC)
    w_r = jnp.pad(w_r, ((0, 0), (0, 0), (0, OC_pad - OC))).astype(jnp.bfloat16)

    scale = bn_gamma / jnp.sqrt(bn_var + eps)                           # (OC,)
    bias = (conv_b - bn_mean) * scale + bn_beta                         # (OC,)
    scale_p = jnp.pad(scale, (0, OC_pad - OC)).reshape(1, OC_pad).astype(jnp.float32)
    bias_p = jnp.pad(bias, (0, OC_pad - OC)).reshape(1, OC_pad).astype(jnp.float32)

    # --- VMEM budget (per-generation) and image buffering -----------------------
    budget = int(0.75 * _VMEM_CAP)               # ~48 MiB v7x, ~96 MiB v5e/v6e
    img_bytes = Hp * _round_up(W_out_pad, 16) * _round_up(KWC, 128) * 2
    img_bufs = 2 if 2 * img_bytes <= budget // 2 else 1
    w_bytes = KH * _round_up(KWC, 16) * tn * 2
    est = (img_bufs * img_bytes
           + 2 * w_bytes
           + 2 * tm * tn * jnp.dtype(out_dtype).itemsize   # double-buffered out
           + tm * tn * 4                                    # f32 acc scratch
           + 4 * tn * 4)                                    # scale / bias
    vmem_limit = int(min(budget, max(2 * est, 32 * 2**20)))

    if img_bufs == 2:
        x_spec = pl.BlockSpec((None, Hp, W_out_pad, KWC),
                              lambda n, j, hb: (n, 0, 0, 0))
    else:
        # Image block index changes only with n: single-buffer on VMEM-tight parts.
        x_spec = pl.BlockSpec((None, Hp, W_out_pad, KWC),
                              lambda n, j, hb: (n, 0, 0, 0),
                              pipeline_mode=pl.Buffered(1))

    kernel = _make_kernel(KH, th, W_out_pad, KWC)

    out2d = pl.pallas_call(
        kernel,
        out_shape=jax.ShapeDtypeStruct((M_pad, OC_pad), out_dtype),
        grid_spec=pltpu.PrefetchScalarGridSpec(
            num_scalar_prefetch=0,
            # TODO(synk): when N == 1 on v7x, lead with OCT/HB so both TCs get work.
            grid=(N, OCT, HB),
            in_specs=[
                x_spec,
                pl.BlockSpec((KH, KWC, tn), lambda n, j, hb: (0, 0, j)),
                pl.BlockSpec((1, tn), lambda n, j, hb: (0, j)),
                pl.BlockSpec((1, tn), lambda n, j, hb: (0, j)),
            ],
            out_specs=pl.BlockSpec((tm, tn), lambda n, j, hb: (n * HB + hb, j)),
            scratch_shapes=[pltpu.VMEM((tm, tn), jnp.float32)],
        ),
        compiler_params=pltpu.CompilerParams(
            dimension_semantics=("parallel", "parallel", "parallel"),
            vmem_limit_bytes=vmem_limit),
    )(x_packed, w_r, scale_p, bias_p)

    out = out2d.reshape(N, H_out_pad, W_out_pad, OC_pad)
    out = out[:, :H_out, :W_out, :OC]
    return jnp.transpose(out, (0, 3, 1, 2))                            # NCHW


# ---------------------------------------------------------------------------
# Reference (pure JAX/XLA) for the correctness check
# ---------------------------------------------------------------------------
def basic_conv2d_ref(x, conv_w, conv_b, bn_gamma, bn_beta, bn_mean, bn_var,
                     *, padding=1):
    y = jax.lax.conv_general_dilated(
        x, conv_w, window_strides=(1, 1),
        padding=[(padding, padding), (padding, padding)],
        dimension_numbers=("NCHW", "OIHW", "NCHW"))
    y = y + conv_b[None, :, None, None]
    eps = 1e-3
    y = (y - bn_mean[None, :, None, None]) / jnp.sqrt(bn_var[None, :, None, None] + eps)
    y = y * bn_gamma[None, :, None, None] + bn_beta[None, :, None, None]
    return jnp.maximum(y, 0.0)


if __name__ == "__main__":
    key = jax.random.PRNGKey(0)
    k_x, k_w, k_b, k_g, k_be, k_m, k_v = jax.random.split(key, 7)

    N, C, H, W = 2, 4, 16, 16
    OC, KS, PAD = 8, 3, 1

    x = jax.random.normal(k_x, (N, C, H, W), dtype=jnp.float32)
    conv_w = jax.random.normal(k_w, (OC, C, KS, KS), dtype=jnp.float32) * 0.1
    conv_b = jax.random.normal(k_b, (OC,), dtype=jnp.float32) * 0.1
    bn_gamma = jax.random.normal(k_g, (OC,), dtype=jnp.float32) * 0.1 + 1.0
    bn_beta = jax.random.normal(k_be, (OC,), dtype=jnp.float32) * 0.1
    bn_mean = jax.random.normal(k_m, (OC,), dtype=jnp.float32) * 0.1
    bn_var = jax.random.uniform(k_v, (OC,), dtype=jnp.float32, minval=0.5, maxval=1.5)

    out = basic_conv2d(x, conv_w, conv_b, bn_gamma, bn_beta, bn_mean, bn_var,
                       kernel_size=KS, padding=PAD)
    out = jax.block_until_ready(out)

    # Reference uses the same bf16-quantized operands (kernel computes with
    # bf16 MXU operands + f32 accumulation), so the comparison isolates kernel
    # correctness from bf16 quantization of the inputs.
    x_q = x.astype(jnp.bfloat16).astype(jnp.float32)
    w_q = conv_w.astype(jnp.bfloat16).astype(jnp.float32)
    ref = basic_conv2d_ref(x_q, w_q, conv_b, bn_gamma, bn_beta, bn_mean, bn_var,
                           padding=PAD)
    ref = jax.block_until_ready(ref)

    assert out.shape == (N, OC, H, W), out.shape
    max_err = float(jnp.max(jnp.abs(out - ref)))
    assert max_err < 5e-3, max_err

    print("KERNEL_OK")
</pallas_src>

<mosaic_0001>
module attributes {stable_mosaic.version = 11 : i64} {
  func.func @kernel(%arg0: i32, %arg1: i32, %arg2: i32, %arg3: memref<1x18x16x12xbf16, #tpu.memory_space<vmem>>, %arg4: memref<3x12x128xbf16, #tpu.memory_space<vmem>>, %arg5: memref<1x128xf32, #tpu.memory_space<vmem>>, %arg6: memref<1x128xf32, #tpu.memory_space<vmem>>, %arg7: memref<256x128xf32, #tpu.memory_space<vmem>>, %arg8: memref<256x128xf32, #tpu.memory_space<vmem>>) attributes {dimension_semantics = [#tpu.dimension_semantics<parallel>, #tpu.dimension_semantics<parallel>, #tpu.dimension_semantics<parallel>], iteration_bounds = array<i64: 2, 1, 1>, scalar_prefetch = 0 : i64, scratch_operands = 1 : i64, tpu.core_type = #tpu.core_type<tc>, window_params = [{transform_indices = @transform_0, window_bounds = array<i64: 1, 18, 16, 12>}, {transform_indices = @transform_1, window_bounds = array<i64: 3, 12, 128>}, {transform_indices = @transform_2, window_bounds = array<i64: 1, 128>}, {transform_indices = @transform_3, window_bounds = array<i64: 1, 128>}, {transform_indices = @transform_4, window_bounds = array<i64: 256, 128>}]} {
    %c16_i32 = arith.constant 16 : i32
    %0 = arith.muli %arg2, %c16_i32 : i32
    %c0_i32 = arith.constant 0 : i32
    %1 = arith.addi %0, %c0_i32 : i32
    %c0 = arith.constant 0 : index
    %2 = arith.index_cast %1 : i32 to index
    %c0_0 = arith.constant 0 : index
    %c0_1 = arith.constant 0 : index
    %3 = vector.load %arg3[%c0, %2, %c0_0, %c0_1] : memref<1x18x16x12xbf16, #tpu.memory_space<vmem>>, vector<1x16x16x12xbf16>
    %4 = vector.shape_cast %3 : vector<1x16x16x12xbf16> to vector<16x16x12xbf16>
    %5 = vector.shape_cast %4 : vector<16x16x12xbf16> to vector<256x12xbf16>
    %c0_2 = arith.constant 0 : index
    %c0_3 = arith.constant 0 : index
    %c0_4 = arith.constant 0 : index
    %6 = vector.load %arg4[%c0_2, %c0_3, %c0_4] : memref<3x12x128xbf16, #tpu.memory_space<vmem>>, vector<1x12x128xbf16>
    %7 = vector.shape_cast %6 : vector<1x12x128xbf16> to vector<12x128xbf16>
    %cst = arith.constant dense<0.000000e+00> : vector<256x128xf32>
    %8 = tpu.matmul %5, %7, %cst {dimension_numbers = #tpu.dot_dimension_numbers<[1], [0], [0], [1], [0, 0, 1, 1], [], []>} : vector<256x12xbf16>, vector<12x128xbf16>, vector<256x128xf32> -> vector<256x128xf32>
    %c0_5 = arith.constant 0 : index
    %c0_6 = arith.constant 0 : index
    %9 = vector.load %arg8[%c0_5, %c0_6] : memref<256x128xf32, #tpu.memory_space<vmem>>, vector<256x128xf32>
    tpu.vector_store %arg8[%c0_5, %c0_6], %8 {strides = array<i32>} : memref<256x128xf32, #tpu.memory_space<vmem>>, vector<256x128xf32>,
    %c1_i32 = arith.constant 1 : i32
    %10 = arith.addi %0, %c1_i32 : i32
    %c0_7 = arith.constant 0 : index
    %11 = arith.index_cast %10 : i32 to index
    %c0_8 = arith.constant 0 : index
    %c0_9 = arith.constant 0 : index
    %12 = vector.load %arg3[%c0_7, %11, %c0_8, %c0_9] : memref<1x18x16x12xbf16, #tpu.memory_space<vmem>>, vector<1x16x16x12xbf16>
    %13 = vector.shape_cast %12 : vector<1x16x16x12xbf16> to vector<16x16x12xbf16>
    %14 = vector.shape_cast %13 : vector<16x16x12xbf16> to vector<256x12xbf16>
    %c1 = arith.constant 1 : index
    %c0_10 = arith.constant 0 : index
    %c0_11 = arith.constant 0 : index
    %15 = vector.load %arg4[%c1, %c0_10, %c0_11] : memref<3x12x128xbf16, #tpu.memory_space<vmem>>, vector<1x12x128xbf16>
    %16 = vector.shape_cast %15 : vector<1x12x128xbf16> to vector<12x128xbf16>
    %cst_12 = arith.constant dense<0.000000e+00> : vector<256x128xf32>
    %17 = tpu.matmul %14, %16, %cst_12 {dimension_numbers = #tpu.dot_dimension_numbers<[1], [0], [0], [1], [0, 0, 1, 1], [], []>} : vector<256x12xbf16>, vector<12x128xbf16>, vector<256x128xf32> -> vector<256x128xf32>
    %c0_13 = arith.constant 0 : index
    %c0_14 = arith.constant 0 : index
    %18 = vector.load %arg8[%c0_13, %c0_14] : memref<256x128xf32, #tpu.memory_space<vmem>>, vector<256x128xf32>
    %19 = arith.addf %18, %17 : vector<256x128xf32>
    %c0_15 = arith.constant 0 : index
    %c0_16 = arith.constant 0 : index
    %20 = vector.load %arg8[%c0_15, %c0_16] : memref<256x128xf32, #tpu.memory_space<vmem>>, vector<256x128xf32>
    tpu.vector_store %arg8[%c0_15, %c0_16], %19 {strides = array<i32>} : memref<256x128xf32, #tpu.memory_space<vmem>>, vector<256x128xf32>,
    %c2_i32 = arith.constant 2 : i32
    %21 = arith.addi %0, %c2_i32 : i32
    %c0_17 = arith.constant 0 : index
    %22 = arith.index_cast %21 : i32 to index
    %c0_18 = arith.constant 0 : index
    %c0_19 = arith.constant 0 : index
    %23 = vector.load %arg3[%c0_17, %22, %c0_18, %c0_19] : memref<1x18x16x12xbf16, #tpu.memory_space<vmem>>, vector<1x16x16x12xbf16>
    %24 = vector.shape_cast %23 : vector<1x16x16x12xbf16> to vector<16x16x12xbf16>
    %25 = vector.shape_cast %24 : vector<16x16x12xbf16> to vector<256x12xbf16>
    %c2 = arith.constant 2 : index
    %c0_20 = arith.constant 0 : index
    %c0_21 = arith.constant 0 : index
    %26 = vector.load %arg4[%c2, %c0_20, %c0_21] : memref<3x12x128xbf16, #tpu.memory_space<vmem>>, vector<1x12x128xbf16>
    %27 = vector.shape_cast %26 : vector<1x12x128xbf16> to vector<12x128xbf16>
    %cst_22 = arith.constant dense<0.000000e+00> : vector<256x128xf32>
    %28 = tpu.matmul %25, %27, %cst_22 {dimension_numbers = #tpu.dot_dimension_numbers<[1], [0], [0], [1], [0, 0, 1, 1], [], []>} : vector<256x12xbf16>, vector<12x128xbf16>, vector<256x128xf32> -> vector<256x128xf32>
    %c0_23 = arith.constant 0 : index
    %c0_24 = arith.constant 0 : index
    %29 = vector.load %arg8[%c0_23, %c0_24] : memref<256x128xf32, #tpu.memory_space<vmem>>, vector<256x128xf32>
    %30 = arith.addf %29, %28 : vector<256x128xf32>
    %c0_25 = arith.constant 0 : index
    %c0_26 = arith.constant 0 : index
    %31 = vector.load %arg8[%c0_25, %c0_26] : memref<256x128xf32, #tpu.memory_space<vmem>>, vector<256x128xf32>
    tpu.vector_store %arg8[%c0_25, %c0_26], %30 {strides = array<i32>} : memref<256x128xf32, #tpu.memory_space<vmem>>, vector<256x128xf32>,
    %c0_27 = arith.constant 0 : index
    %c0_28 = arith.constant 0 : index
    %32 = vector.load %arg8[%c0_27, %c0_28] : memref<256x128xf32, #tpu.memory_space<vmem>>, vector<256x128xf32>
    %c0_29 = arith.constant 0 : index
    %c0_30 = arith.constant 0 : index
    %33 = vector.load %arg5[%c0_29, %c0_30] : memref<1x128xf32, #tpu.memory_space<vmem>>, vector<1x128xf32>
    %34 = vector.broadcast %33 : vector<1x128xf32> to vector<256x128xf32>
    %35 = arith.mulf %32, %34 : vector<256x128xf32>
    %c0_31 = arith.constant 0 : index
    %c0_32 = arith.constant 0 : index
    %36 = vector.load %arg6[%c0_31, %c0_32] : memref<1x128xf32, #tpu.memory_space<vmem>>, vector<1x128xf32>
    %37 = vector.broadcast %36 : vector<1x128xf32> to vector<256x128xf32>
    %38 = arith.addf %35, %37 : vector<256x128xf32>
    %cst_33 = arith.constant 0.000000e+00 : f32
    %39 = vector.broadcast %cst_33 : f32 to vector<256x128xf32>
    %40 = arith.maximumf %38, %39 : vector<256x128xf32>
    %c0_34 = arith.constant 0 : index
    %c0_35 = arith.constant 0 : index
    %41 = vector.load %arg7[%c0_34, %c0_35] : memref<256x128xf32, #tpu.memory_space<vmem>>, vector<256x128xf32>
    tpu.vector_store %arg7[%c0_34, %c0_35], %40 {strides = array<i32>} : memref<256x128xf32, #tpu.memory_space<vmem>>, vector<256x128xf32>,
    return
  }
  func.func @transform_0(%arg0: i32, %arg1: i32, %arg2: i32) -> (i32, i32, i32, i32) {
    %c0_i32 = arith.constant 0 : i32
    %c0_i32_0 = arith.constant 0 : i32
    %c0_i32_1 = arith.constant 0 : i32
    %c0_i32_2 = arith.constant 0 : i32
    return %arg0, %c0_i32, %c0_i32_0, %c0_i32_1 : i32, i32, i32, i32
  }
  func.func @transform_1(%arg0: i32, %arg1: i32, %arg2: i32) -> (i32, i32, i32) {
    %c0_i32 = arith.constant 0 : i32
    %c0_i32_0 = arith.constant 0 : i32
    %c0_i32_1 = arith.constant 0 : i32
    return %c0_i32, %c0_i32_0, %arg1 : i32, i32, i32
  }
  func.func @transform_2(%arg0: i32, %arg1: i32, %arg2: i32) -> (i32, i32) {
    %c0_i32 = arith.constant 0 : i32
    %c0_i32_0 = arith.constant 0 : i32
    return %c0_i32, %arg1 : i32, i32
  }
  func.func @transform_3(%arg0: i32, %arg1: i32, %arg2: i32) -> (i32, i32) {
    %c0_i32 = arith.constant 0 : i32
    %c0_i32_0 = arith.constant 0 : i32
    return %c0_i32, %arg1 : i32, i32
  }
  func.func @transform_4(%arg0: i32, %arg1: i32, %arg2: i32) -> (i32, i32) {
    %c1_i32 = arith.constant 1 : i32
    %0 = arith.muli %arg0, %c1_i32 : i32
    %1 = arith.addi %0, %arg2 : i32
    %c0_i32 = arith.constant 0 : i32
    return %1, %arg1 : i32, i32
  }
}

</mosaic_0001>

<llo_original>
// kernel: basic_conv2d.1
$region0: #{basic_conv2d.1}
  #allocation0 [shape = 'u32[]', space=smem, size = 0x4, offset = 0x4, fixed_abs, tag = 'smem constant byte address 0x4 - core index']
  #allocation1 [shape = 'u32[72,128]{1,0:T(1,128)}', space=vmem, size = 0x9000, scoped, tag = 'internal scratch']
  #allocation2 [shape = 'f32[256,128]{1,0:T(8,128)}', space=vmem, size = 0x20000, scoped, tag = 'scratch operand']
  %s0 = inlined_call_operand.vmem [shape: bf16[2,18,16,12], index: 0, kind: input, shape index: {}]
  %s1 = inlined_call_operand.vmem [shape: bf16[3,12,128], index: 1, kind: input, shape index: {}]
  %s2 = inlined_call_operand.vmem [shape: f32[1,128], index: 2, kind: input, shape index: {}]
  %s3 = inlined_call_operand.vmem [shape: f32[1,128], index: 3, kind: input, shape index: {}]
  %s4 = inlined_call_operand.vmem [shape: f32[512,128], index: 4, kind: output, shape index: {}]
  %s5 = sld [smem:[#allocation0]]
  $region49: #{basic_conv2d.1} parent=0
    _
  %s7 = ssub.s32 1, %s5
  %s8 = scalar_select 0, %s7, %s5
  loop: start=0, step=1, limit=4
  $region2: #{basic_conv2d.1} parent=0 // loop_pre_header
    _
  $region3: #{basic_conv2d.1} parent=0 // loop_header
    %s10 = sphi 0, %s14
    %p11 = scmp.ge.s32.totalorder %s10, 4
    %s17 = sphi 0, %s36
    %s18 = sphi 0, %s32
    %s19 = sphi 0, %s28
    %s20 = sphi 0, %s17
    %s21 = sphi 0, %s18
    %s22 = sphi 0, %s19
    %s23 = sphi 0, %s20
    %s24 = sphi 0, %s21
    %s25 = sphi 0, %s22
    %s39 = sphi 0, %s41
    %s42 = sphi 0, %s39
    %s43 = sphi 0, %s42
    %s59 = sphi 0, %s43
    %s65 = sphi 0, %s67
    %s68 = sphi 0, %s65
    %s69 = sphi 0, %s68
    %s85 = sphi 0, %s69
    %s91 = sphi 0, %s93
    %s94 = sphi 0, %s91
    %s95 = sphi 0, %s94
    %s111 = sphi 0, %s95
    %s117 = sphi 0, %s119
    %s120 = sphi 0, %s117
    %s121 = sphi 0, %s120
    %s137 = sphi 0, %s121
    %s147 = sphi 0, %s149
    %s150 = sphi 0, %s147
    %s151 = sphi 0, %s150
    %s167 = sphi 0, %s151
  $region4: #{basic_conv2d.1} parent=0 // loop_header_branch
    %13 = sbr.rel (%p11) target = $region8
  $region5: #{basic_conv2d.1} parent=0 // loop_body
    %s15 = ssub.s32 %s10, 1
    %s16 = ssub.s32 %s10, 2
    %s26 = sadd.s32 1, %s19
    %p27 = scmp.ge.s32.totalorder %s26, 1
    %s28 = scalar_select %p27, 0, %s26
    %s29 = sadd.s32 1, %s18
    %s30 = scalar_select %p27, %s29, %s18
    %p31 = scmp.ge.s32.totalorder %s30, 1
    %s32 = scalar_select %p31, 0, %s30
    %s33 = sadd.s32 1, %s17
    %s34 = scalar_select %p31, %s33, %s17
    %p35 = scmp.ge.s32.totalorder %s34, 2
    %s36 = scalar_select %p35, 0, %s34
    %s37 = ssub.s32 %s17, %s36
    %p38 = scmp.eq.s32.totalorder %s37, 0
    %s40 = sadd.s32 %s39, 1
    %s41 = scalar_select %p38, %s39, %s40
    %p44 = pneg %p38
    %p45 = scmp.eq.s32.totalorder %s10, 1
    %p46 = por %p44, %p45
    %p47 = scmp.ne.s32.totalorder %s39, %s42
    %p48 = scmp.eq.s32.totalorder %s10, 0
    %p49 = por %p47, %p48
    %p50 = scmp.ne.s32.totalorder %s39, %s42
    %p51 = scmp.eq.s32.totalorder %s15, 1
    %p52 = por %p50, %p51
    %p53 = scmp.ne.s32.totalorder %s42, %s43
    %p54 = scmp.eq.s32.totalorder %s15, 0
    %p55 = por %p53, %p54
    %p56 = scmp.ne.s32.totalorder %s42, %s43
    %p57 = scmp.eq.s32.totalorder %s16, 1
    %p58 = por %p56, %p57
    %p60 = scmp.ne.s32.totalorder %s43, %s59
    %p61 = scmp.eq.s32.totalorder %s16, 0
    %p62 = por %p60, %p61
    %s63 = ssub.s32 %s18, %s32
    %p64 = scmp.eq.s32.totalorder %s63, 0
    %s66 = sadd.s32 %s65, 1
    %s67 = scalar_select %p64, %s65, %s66
    %p70 = pneg %p64
    %p71 = scmp.eq.s32.totalorder %s10, 1
    %p72 = por %p70, %p71
    %p73 = scmp.ne.s32.totalorder %s65, %s68
    %p74 = scmp.eq.s32.totalorder %s10, 0
    %p75 = por %p73, %p74
    %p76 = scmp.ne.s32.totalorder %s65, %s68
    %p77 = scmp.eq.s32.totalorder %s15, 1
    %p78 = por %p76, %p77
    %p79 = scmp.ne.s32.totalorder %s68, %s69
    %p80 = scmp.eq.s32.totalorder %s15, 0
    %p81 = por %p79, %p80
    %p82 = scmp.ne.s32.totalorder %s68, %s69
    %p83 = scmp.eq.s32.totalorder %s16, 1
    %p84 = por %p82, %p83
    %p86 = scmp.ne.s32.totalorder %s69, %s85
    %p87 = scmp.eq.s32.totalorder %s16, 0
    %p88 = por %p86, %p87
    %s89 = ssub.s32 %s18, %s32
    %p90 = scmp.eq.s32.totalorder %s89, 0
    %s92 = sadd.s32 %s91, 1
    %s93 = scalar_select %p90, %s91, %s92
    %p96 = pneg %p90
    %p97 = scmp.eq.s32.totalorder %s10, 1
    %p98 = por %p96, %p97
    %p99 = scmp.ne.s32.totalorder %s91, %s94
    %p100 = scmp.eq.s32.totalorder %s10, 0
    %p101 = por %p99, %p100
    %p102 = scmp.ne.s32.totalorder %s91, %s94
    %p103 = scmp.eq.s32.totalorder %s15, 1
    %p104 = por %p102, %p103
    %p105 = scmp.ne.s32.totalorder %s94, %s95
    %p106 = scmp.eq.s32.totalorder %s15, 0
    %p107 = por %p105, %p106
    %p108 = scmp.ne.s32.totalorder %s94, %s95
    %p109 = scmp.eq.s32.totalorder %s16, 1
    %p110 = por %p108, %p109
    %p112 = scmp.ne.s32.totalorder %s95, %s111
    %p113 = scmp.eq.s32.totalorder %s16, 0
    %p114 = por %p112, %p113
    %s115 = ssub.s32 %s18, %s32
    %p116 = scmp.eq.s32.totalorder %s115, 0
    %s118 = sadd.s32 %s117, 1
    %s119 = scalar_select %p116, %s117, %s118
    %p122 = pneg %p116
    %p123 = scmp.eq.s32.totalorder %s10, 1
    %p124 = por %p122, %p123
    %p125 = scmp.ne.s32.totalorder %s117, %s120
    %p126 = scmp.eq.s32.totalorder %s10, 0
    %p127 = por %p125, %p126
    %p128 = scmp.ne.s32.totalorder %s117, %s120
    %p129 = scmp.eq.s32.totalorder %s15, 1
    %p130 = por %p128, %p129
    %p131 = scmp.ne.s32.totalorder %s120, %s121
    %p132 = scmp.eq.s32.totalorder %s15, 0
    %p133 = por %p131, %p132
    %p134 = scmp.ne.s32.totalorder %s120, %s121
    %p135 = scmp.eq.s32.totalorder %s16, 1
    %p136 = por %p134, %p135
    %p138 = scmp.ne.s32.totalorder %s121, %s137
    %p139 = scmp.eq.s32.totalorder %s16, 0
    %p140 = por %p138, %p139
    %s141 = sadd.s32 %s17, %s19
    %s142 = sadd.s32 %s36, %s28
    %s143 = ssub.s32 %s141, %s142
    %s144 = ssub.s32 %s18, %s32
    %s145 = sor.u32 %s143, %s144
    %p146 = scmp.eq.s32.totalorder %s145, 0
    %s148 = sadd.s32 %s147, 1
    %s149 = scalar_select %p146, %s147, %s148
    %p152 = pneg %p146
    %p153 = scmp.eq.s32.totalorder %s10, 1
    %p154 = por %p152, %p153
    %p155 = scmp.ne.s32.totalorder %s147, %s150
    %p156 = scmp.eq.s32.totalorder %s10, 0
    %p157 = por %p155, %p156
    %p158 = scmp.ne.s32.totalorder %s147, %s150
    %p159 = scmp.eq.s32.totalorder %s15, 1
    %p160 = por %p158, %p159
    %p161 = scmp.ne.s32.totalorder %s150, %s151
    %p162 = scmp.eq.s32.totalorder %s15, 0
    %p163 = por %p161, %p162
    %p164 = scmp.ne.s32.totalorder %s150, %s151
    %p165 = scmp.eq.s32.totalorder %s16, 1
    %p166 = por %p164, %p165
    %p168 = scmp.ne.s32.totalorder %s151, %s167
    %p169 = scmp.eq.s32.totalorder %s16, 0
    %p170 = por %p168, %p169
    %p171 = scmp.le.s32.totalorder 1, %s10
    %p172 = scmp.lt.s32.totalorder %s10, 3
    %p173 = pnand %p171, %p172
    %p174 = pneg %p173
    // Predicated region
    $region9: #{basic_conv2d.1} parent=5 // pred_check
      _
    $region10: #{basic_conv2d.1} parent=5 // pred_check_branch
      %176 = sbr.rel (%p173) target = $region12
    $region11: #{basic_conv2d.1} parent=5 // pred_region
      %s177 = ssub.s32 %s10, 1
      // Predicated region
      $region13: #{basic_conv2d.1} parent=11 // pred_check
        %p178 = pneg %p81
      $region14: #{basic_conv2d.1} parent=11 // pred_check_branch
        %180 = sbr.rel (%p178) target = $region16
      $region15: #{basic_conv2d.1} parent=11 // pred_region
        %p181 = scmp.lt.s32.totalorder %s21, 0
        %s182 = scalar_select %p181, %s21, 0
        %s183 = smul.addr %s182, 4
        %s184 = scalar_lea.vmem %s1, %s183
      $region16: #{basic_conv2d.1} parent=11 // pred_fallthru
        _
      // Predicated region
      $region17: #{basic_conv2d.1} parent=11 // pred_check
        %p185 = pneg %p107
      $region18: #{basic_conv2d.1} parent=11 // pred_check_branch
        %187 = sbr.rel (%p185) target = $region20
      $region19: #{basic_conv2d.1} parent=11 // pred_region
        %p188 = scmp.lt.s32.totalorder %s21, 0
        %s189 = scalar_select %p188, %s21, 0
        %s190 = scalar_lea.vmem %s2, %s189
      $region20: #{basic_conv2d.1} parent=11 // pred_fallthru
        _
      // Predicated region
      $region21: #{basic_conv2d.1} parent=11 // pred_check
        %p191 = pneg %p133
      $region22: #{basic_conv2d.1} parent=11 // pred_check_branch
        %193 = sbr.rel (%p191) target = $region24
      $region23: #{basic_conv2d.1} parent=11 // pred_region
        %p194 = scmp.lt.s32.totalorder %s21, 0
        %s195 = scalar_select %p194, %s21, 0
        %s196 = scalar_lea.vmem %s3, %s195
      $region24: #{basic_conv2d.1} parent=11 // pred_fallthru
        _
    $region12: #{basic_conv2d.1} parent=5 // pred_fallthru
      _
    %p197 = scmp.lt.s32.totalorder %s10, 2
    // Predicated region
    $region25: #{basic_conv2d.1} parent=5 // pred_check
      %p198 = pneg %p197
    $region26: #{basic_conv2d.1} parent=5 // pred_check_branch
      %200 = sbr.rel (%p198) target = $region28
    $region27: #{basic_conv2d.1} parent=5 // pred_region
      // Predicated region
      $region29: #{basic_conv2d.1} parent=27 // pred_check
        %p201 = pneg %p49
      $region30: #{basic_conv2d.1} parent=27 // pred_check_branch
        %203 = sbr.rel (%p201) target = $region32
      $region31: #{basic_conv2d.1} parent=27 // pred_region
        %p204 = scmp.lt.s32.totalorder %s17, 1
        %s205 = scalar_select %p204, %s17, 1
        %s206 = smul.addr %s205, 36
        %s207 = smul.addr %s206, 4
        %s208 = scalar_lea.vmem %s0, %s207
      $region32: #{basic_conv2d.1} parent=27 // pred_fallthru
        _
    $region28: #{basic_conv2d.1} parent=5 // pred_fallthru
      _
    %p209 = scmp.le.s32.totalorder 1, %s10
    %p210 = scmp.lt.s32.totalorder %s10, 3
    %p211 = pnand %p209, %p210
    %p212 = pneg %p211
    // Predicated region
    $region33: #{basic_conv2d.1} parent=5 // pred_check
      _
    $region34: #{basic_conv2d.1} parent=5 // pred_check_branch
      %214 = sbr.rel (%p211) target = $region36
    $region35: #{basic_conv2d.1} parent=5 // pred_region
      %s215 = ssub.s32 %s10, 1
      %p216 = scmp.lt.s32.totalorder %s20, 1
      %s217 = scalar_select %p216, %s20, 1
      %s218 = smul.addr %s217, 36
      %s219 = smul.addr %s218, 4
      %s220 = scalar_lea.vmem %s0, %s219
      %p221 = pneg %p55
      %p222 = pneg %p52
      %p223 = scmp.lt.s32.totalorder %s21, 0
      %s224 = scalar_select %p223, %s21, 0
      %s225 = smul.addr %s224, 4
      %s226 = scalar_lea.vmem %s1, %s225
      %p227 = pneg %p81
      %p228 = pneg %p78
      %p229 = scmp.lt.s32.totalorder %s21, 0
      %s230 = scalar_select %p229, %s21, 0
      %s231 = scalar_lea.vmem %s2, %s230
      %p232 = pneg %p107
      %p233 = pneg %p104
      %p234 = scmp.lt.s32.totalorder %s21, 0
      %s235 = scalar_select %p234, %s21, 0
      %s236 = scalar_lea.vmem %s3, %s235
      %p237 = pneg %p133
      %p238 = pneg %p130
      %p239 = pneg %p163
      %p240 = pneg %p160
      %s241 = sadd.s32 %s20, %s22
      %s242 = smul.u32 32, %s241
      %p243 = scmp.lt.s32.totalorder %s242, 63
      %s244 = scalar_select %p243, %s242, 63
      %p245 = scmp.lt.s32.totalorder %s21, 0
      %s246 = scalar_select %p245, %s21, 0
      %s247 = sadd.s32 %s246, %s244
      %s248 = smul.addr %s247, 8
      %s249 = scalar_lea.vmem %s4, %s248
      %p250 = scmp.lt.s32.totalorder %s20, 1
      %s251 = scalar_select %p250, %s20, 1
      %s252 = smul.addr %s251, 36
      %s253 = smul.addr %s252, 4
      %s254 = scalar_lea.vmem %s0, %s253
      %p255 = scmp.lt.s32.totalorder %s21, 0
      %s256 = scalar_select %p255, %s21, 0
      %s257 = smul.addr %s256, 4
      %s258 = scalar_lea.vmem %s1, %s257
      %p259 = scmp.lt.s32.totalorder %s21, 0
      %s260 = scalar_select %p259, %s21, 0
      %s261 = scalar_lea.vmem %s2, %s260
      %p262 = scmp.lt.s32.totalorder %s21, 0
      %s263 = scalar_select %p262, %s21, 0
      %s264 = scalar_lea.vmem %s3, %s263
      %s265 = sadd.s32 %s20, %s22
      %s266 = smul.u32 32, %s265
      %p267 = scmp.lt.s32.totalorder %s266, 63
      %s268 = scalar_select %p267, %s266, 63
      %p269 = scmp.lt.s32.totalorder %s21, 0
      %s270 = scalar_select %p269, %s21, 0
      %s271 = sadd.s32 %s270, %s268
      %s272 = smul.addr %s271, 8
      %s273 = scalar_lea.vmem %s4, %s272
      %s274 = sadd.s32 %s20, %s22
      %s275 = smul.u32 32, %s274
      %s277 = smul.u32 %s22, 16
      %s278 = smul.u32 %s277, 2
      %s279 = smul.addr %s278, 4
      %s280 = scalar_lea.vmem %s254, %s279
      %v281 = vld [vmem:[%s280] sm:$0xf]
      %v282 = vld [vmem:[%s280 + $0x4] sm:$0xf]
      %v283 = vld [vmem:[%s280 + $0x8] sm:$0xf]
      %v284 = vld [vmem:[%s280 + $0xc] sm:$0xf]
      %v285 = vld [vmem:[%s280 + $0x10] sm:$0xf]
      %v286 = vld [vmem:[%s280 + $0x14] sm:$0xf]
      %v287 = vld [vmem:[%s280 + $0x18] sm:$0xf]
      %v288 = vld [vmem:[%s280 + $0x1c] sm:$0xf]
      %v289 = vld [vmem:[%s280 + $0x20] sm:$0xf]
      %v290 = vld [vmem:[%s280 + $0x24] sm:$0xf]
      %v291 = vld [vmem:[%s280 + $0x28] sm:$0xf]
      %v292 = vld [vmem:[%s280 + $0x2c] sm:$0xf]
      %v293 = vld [vmem:[%s280 + $0x30] sm:$0xf]
      %v294 = vld [vmem:[%s280 + $0x34] sm:$0xf]
      %v295 = vld [vmem:[%s280 + $0x38] sm:$0xf]
      %v296 = vld [vmem:[%s280 + $0x3c] sm:$0xf]
      %v297 = vld [vmem:[%s280 + $0x40] sm:$0xf]
      %v298 = vld [vmem:[%s280 + $0x44] sm:$0xf]
      %v299 = vld [vmem:[%s280 + $0x48] sm:$0xf]
      %v300 = vld [vmem:[%s280 + $0x4c] sm:$0xf]
      %v301 = vld [vmem:[%s280 + $0x50] sm:$0xf]
      %v302 = vld [vmem:[%s280 + $0x54] sm:$0xf]
      %v303 = vld [vmem:[%s280 + $0x58] sm:$0xf]
      %v304 = vld [vmem:[%s280 + $0x5c] sm:$0xf]
      %v305 = vld [vmem:[%s280 + $0x60] sm:$0xf]
      %v306 = vld [vmem:[%s280 + $0x64] sm:$0xf]
      %v307 = vld [vmem:[%s280 + $0x68] sm:$0xf]
      %v308 = vld [vmem:[%s280 + $0x6c] sm:$0xf]
      %v309 = vld [vmem:[%s280 + $0x70] sm:$0xf]
      %v310 = vld [vmem:[%s280 + $0x74] sm:$0xf]
      %v311 = vld [vmem:[%s280 + $0x78] sm:$0xf]
      %v312 = vld [vmem:[%s280 + $0x7c] sm:$0xf]
      %v313 = vld [vmem:[%s258] sm:$0xf]
      %v314 = vld [vmem:[%s258 + $0x4] sm:$0x3]
      %v347 = vunpack.c.l.b16 %v281
      %v348 = vunpack.c.l.b16 %v282
      %v349 = vunpack.c.l.b16 %v283
      %v350 = vunpack.c.l.b16 %v284
      %v351 = vunpack.c.l.b16 %v285
      %v352 = vunpack.c.l.b16 %v286
      %v353 = vunpack.c.l.b16 %v287
      %v354 = vunpack.c.l.b16 %v288
      %v355 = vunpack.c.l.b16 %v289
      %v356 = vunpack.c.l.b16 %v290
      %v357 = vunpack.c.l.b16 %v291
      %v358 = vunpack.c.l.b16 %v292
      %v359 = vunpack.c.l.b16 %v293
      %v360 = vunpack.c.l.b16 %v294
      %v361 = vunpack.c.l.b16 %v295
      %v362 = vunpack.c.l.b16 %v296
      %v363 = vunpack.c.l.b16 %v297
      %v364 = vunpack.c.l.b16 %v298
      %v365 = vunpack.c.l.b16 %v299
      %v366 = vunpack.c.l.b16 %v300
      %v367 = vunpack.c.l.b16 %v301
      %v368 = vunpack.c.l.b16 %v302
      %v369 = vunpack.c.l.b16 %v303
      %v370 = vunpack.c.l.b16 %v304
      %v371 = vunpack.c.l.b16 %v305
      %v372 = vunpack.c.l.b16 %v306
      %v373 = vunpack.c.l.b16 %v307
      %v374 = vunpack.c.l.b16 %v308
      %v375 = vunpack.c.l.b16 %v309
      %v376 = vunpack.c.l.b16 %v310
      %v377 = vunpack.c.l.b16 %v311
      %v378 = vunpack.c.l.b16 %v312
      %v379 = vpack.c.b16 %v348, %v347
      %v380 = vpack.c.b16 %v350, %v349
      %v381 = vpack.c.b16 %v352, %v351
      %v382 = vpack.c.b16 %v354, %v353
      %v383 = vpack.c.b16 %v356, %v355
      %v384 = vpack.c.b16 %v358, %v357
      %v385 = vpack.c.b16 %v360, %v359
      %v386 = vpack.c.b16 %v362, %v361
      %v387 = vpack.c.b16 %v364, %v363
      %v388 = vpack.c.b16 %v366, %v365
      %v389 = vpack.c.b16 %v368, %v367
      %v390 = vpack.c.b16 %v370, %v369
      %v391 = vpack.c.b16 %v372, %v371
      %v392 = vpack.c.b16 %v374, %v373
      %v393 = vpack.c.b16 %v376, %v375
      %v394 = vpack.c.b16 %v378, %v377
      %v397 = vunpack.c.l.b16 %v313
      %v398 = vunpack.c.l.b16 %v314
      %v399 = vpack.c.b16 %v398, %v397
      %vm400 = vcmask 97280
      %v402 = vsel %vm400, %v379, 0
      %v405 = vsel %vm400, %v380, 0
      %v408 = vsel %vm400, %v381, 0
      %v411 = vsel %vm400, %v382, 0
      %v414 = vsel %vm400, %v383, 0
      %v417 = vsel %vm400, %v384, 0
      %v420 = vsel %vm400, %v385, 0
      %v423 = vsel %vm400, %v386, 0
      %v426 = vsel %vm400, %v387, 0
      %v429 = vsel %vm400, %v388, 0
      %v432 = vsel %vm400, %v389, 0
      %v435 = vsel %vm400, %v390, 0
      %v438 = vsel %vm400, %v391, 0
      %v441 = vsel %vm400, %v392, 0
      %v444 = vsel %vm400, %v393, 0
      %v447 = vsel %vm400, %v394, 0
      %vm449 = vcmask 1045504
      %v451 = vsel %vm449, %v399, 0
      %453 = vmatpush.bf16.msra.mxu0 0
      %454 = vmatpush.bf16.msra.mxu0 0
      %455 = vmatpush.bf16.msra.mxu0 0
      %456 = vmatpush.bf16.msra.mxu0 0
      %457 = vmatpush.bf16.msra.mxu0 0
      %458 = vmatpush.bf16.msra.mxu0 0
      %459 = vmatpush.bf16.msra.mxu0 0
      %460 = vmatpush.bf16.msra.mxu0 %v451
      %461 = vmatmul.bf16.gmra.mxu0 %v402
      %v462 = vpop.f32.mrf.mxu0
      %v463 = vadd.f32 0.0, %v462
      %v464 = vpop.f32.mrf.mxu0
      %v465 = vadd.f32 0.0, %v464
      %466 = vmatmul.bf16.gmra.mxu0 %v405
      %v467 = vpop.f32.mrf.mxu0
      %v468 = vadd.f32 0.0, %v467
      %v469 = vpop.f32.mrf.mxu0
      %v470 = vadd.f32 0.0, %v469
      %471 = vmatmul.bf16.gmra.mxu0 %v408
      %v472 = vpop.f32.mrf.mxu0
      %v473 = vadd.f32 0.0, %v472
      %v474 = vpop.f32.mrf.mxu0
      %v475 = vadd.f32 0.0, %v474
      %476 = vmatmul.bf16.gmra.mxu0 %v411
      %v477 = vpop.f32.mrf.mxu0
      %v478 = vadd.f32 0.0, %v477
      %v479 = vpop.f32.mrf.mxu0
      %v480 = vadd.f32 0.0, %v479
      %481 = vmatmul.bf16.gmra.mxu0 %v414
      %v482 = vpop.f32.mrf.mxu0
      %v483 = vadd.f32 0.0, %v482
      %v484 = vpop.f32.mrf.mxu0
      %v485 = vadd.f32 0.0, %v484
      %486 = vmatmul.bf16.gmra.mxu0 %v417
      %v487 = vpop.f32.mrf.mxu0
      %v488 = vadd.f32 0.0, %v487
      %v489 = vpop.f32.mrf.mxu0
      %v490 = vadd.f32 0.0, %v489
      %491 = vmatmul.bf16.gmra.mxu0 %v420
      %v492 = vpop.f32.mrf.mxu0
      %v493 = vadd.f32 0.0, %v492
      %v494 = vpop.f32.mrf.mxu0
      %v495 = vadd.f32 0.0, %v494
      %496 = vmatmul.bf16.gmra.mxu0 %v423
      %v497 = vpop.f32.mrf.mxu0
      %v498 = vadd.f32 0.0, %v497
      %v499 = vpop.f32.mrf.mxu0
      %v500 = vadd.f32 0.0, %v499
      %501 = vmatmul.bf16.gmra.mxu0 %v426
      %v502 = vpop.f32.mrf.mxu0
      %v503 = vadd.f32 0.0, %v502
      %v504 = vpop.f32.mrf.mxu0
      %v505 = vadd.f32 0.0, %v504
      %506 = vmatmul.bf16.gmra.mxu0 %v429
      %v507 = vpop.f32.mrf.mxu0
      %v508 = vadd.f32 0.0, %v507
      %v509 = vpop.f32.mrf.mxu0
      %v510 = vadd.f32 0.0, %v509
      %511 = vmatmul.bf16.gmra.mxu0 %v432
      %v512 = vpop.f32.mrf.mxu0
      %v513 = vadd.f32 0.0, %v512
      %v514 = vpop.f32.mrf.mxu0
      %v515 = vadd.f32 0.0, %v514
      %516 = vmatmul.bf16.gmra.mxu0 %v435
      %v517 = vpop.f32.mrf.mxu0
      %v518 = vadd.f32 0.0, %v517
      %v519 = vpop.f32.mrf.mxu0
      %v520 = vadd.f32 0.0, %v519
      %521 = vmatmul.bf16.gmra.mxu0 %v438
      %v522 = vpop.f32.mrf.mxu0
      %v523 = vadd.f32 0.0, %v522
      %v524 = vpop.f32.mrf.mxu0
      %v525 = vadd.f32 0.0, %v524
      %526 = vmatmul.bf16.gmra.mxu0 %v441
      %v527 = vpop.f32.mrf.mxu0
      %v528 = vadd.f32 0.0, %v527
      %v529 = vpop.f32.mrf.mxu0
      %v530 = vadd.f32 0.0, %v529
      %531 = vmatmul.bf16.gmra.mxu0 %v444
      %v532 = vpop.f32.mrf.mxu0
      %v533 = vadd.f32 0.0, %v532
      %v534 = vpop.f32.mrf.mxu0
      %v535 = vadd.f32 0.0, %v534
      %536 = vmatmul.bf16.gmra.mxu0 %v447
      %v537 = vpop.f32.mrf.mxu0
      %v538 = vadd.f32 0.0, %v537
      %v539 = vpop.f32.mrf.mxu0
      %v540 = vadd.f32 0.0, %v539
      %541 = vdwg.mxu0
      %542 = vst [vmem:[#allocation2] sm:$0xff] %v463
      %543 = vst [vmem:[#allocation2 + $0x8] sm:$0xff] %v465
      %544 = vst [vmem:[#allocation2 + $0x10] sm:$0xff] %v468
      %545 = vst [vmem:[#allocation2 + $0x18] sm:$0xff] %v470
      %546 = vst [vmem:[#allocation2 + $0x20] sm:$0xff] %v473
      %547 = vst [vmem:[#allocation2 + $0x28] sm:$0xff] %v475
      %548 = vst [vmem:[#allocation2 + $0x30] sm:$0xff] %v478
      %549 = vst [vmem:[#allocation2 + $0x38] sm:$0xff] %v480
      %550 = vst [vmem:[#allocation2 + $0x40] sm:$0xff] %v483
      %551 = vst [vmem:[#allocation2 + $0x48] sm:$0xff] %v485
      %552 = vst [vmem:[#allocation2 + $0x50] sm:$0xff] %v488
      %553 = vst [vmem:[#allocation2 + $0x58] sm:$0xff] %v490
      %554 = vst [vmem:[#allocation2 + $0x60] sm:$0xff] %v493
      %555 = vst [vmem:[#allocation2 + $0x68] sm:$0xff] %v495
      %556 = vst [vmem:[#allocation2 + $0x70] sm:$0xff] %v498
      %557 = vst [vmem:[#allocation2 + $0x78] sm:$0xff] %v500
      %558 = vst [vmem:[#allocation2 + $0x80] sm:$0xff] %v503
      %559 = vst [vmem:[#allocation2 + $0x88] sm:$0xff] %v505
      %560 = vst [vmem:[#allocation2 + $0x90] sm:$0xff] %v508
      %561 = vst [vmem:[#allocation2 + $0x98] sm:$0xff] %v510
      %562 = vst [vmem:[#allocation2 + $0xa0] sm:$0xff] %v513
      %563 = vst [vmem:[#allocation2 + $0xa8] sm:$0xff] %v515
      %564 = vst [vmem:[#allocation2 + $0xb0] sm:$0xff] %v518
      %565 = vst [vmem:[#allocation2 + $0xb8] sm:$0xff] %v520
      %566 = vst [vmem:[#allocation2 + $0xc0] sm:$0xff] %v523
      %567 = vst [vmem:[#allocation2 + $0xc8] sm:$0xff] %v525
      %568 = vst [vmem:[#allocation2 + $0xd0] sm:$0xff] %v528
      %569 = vst [vmem:[#allocation2 + $0xd8] sm:$0xff] %v530
      %570 = vst [vmem:[#allocation2 + $0xe0] sm:$0xff] %v533
      %571 = vst [vmem:[#allocation2 + $0xe8] sm:$0xff] %v535
      %572 = vst [vmem:[#allocation2 + $0xf0] sm:$0xff] %v538
      %573 = vst [vmem:[#allocation2 + $0xf8] sm:$0xff] %v540
      %s574 = sadd.s32 %s277, 1
      %s575 = smul.u32 %s574, 2
      %s576 = smul.addr %s575, 4
      %s577 = scalar_lea.vmem %s254, %s576
      %v578 = vld [vmem:[%s577] sm:$0xf]
      %v579 = vld [vmem:[%s577 + $0x4] sm:$0xf]
      %v580 = vld [vmem:[%s577 + $0x8] sm:$0xf]
      %v581 = vld [vmem:[%s577 + $0xc] sm:$0xf]
      %v582 = vld [vmem:[%s577 + $0x10] sm:$0xf]
      %v583 = vld [vmem:[%s577 + $0x14] sm:$0xf]
      %v584 = vld [vmem:[%s577 + $0x18] sm:$0xf]
      %v585 = vld [vmem:[%s577 + $0x1c] sm:$0xf]
      %v586 = vld [vmem:[%s577 + $0x20] sm:$0xf]
      %v587 = vld [vmem:[%s577 + $0x24] sm:$0xf]
      %v588 = vld [vmem:[%s577 + $0x28] sm:$0xf]
      %v589 = vld [vmem:[%s577 + $0x2c] sm:$0xf]
      %v590 = vld [vmem:[%s577 + $0x30] sm:$0xf]
      %v591 = vld [vmem:[%s577 + $0x34] sm:$0xf]
      %v592 = vld [vmem:[%s577 + $0x38] sm:$0xf]
      %v593 = vld [vmem:[%s577 + $0x3c] sm:$0xf]
      %v594 = vld [vmem:[%s577 + $0x40] sm:$0xf]
      %v595 = vld [vmem:[%s577 + $0x44] sm:$0xf]
      %v596 = vld [vmem:[%s577 + $0x48] sm:$0xf]
      %v597 = vld [vmem:[%s577 + $0x4c] sm:$0xf]
      %v598 = vld [vmem:[%s577 + $0x50] sm:$0xf]
      %v599 = vld [vmem:[%s577 + $0x54] sm:$0xf]
      %v600 = vld [vmem:[%s577 + $0x58] sm:$0xf]
      %v601 = vld [vmem:[%s577 + $0x5c] sm:$0xf]
      %v602 = vld [vmem:[%s577 + $0x60] sm:$0xf]
      %v603 = vld [vmem:[%s577 + $0x64] sm:$0xf]
      %v604 = vld [vmem:[%s577 + $0x68] sm:$0xf]
      %v605 = vld [vmem:[%s577 + $0x6c] sm:$0xf]
      %v606 = vld [vmem:[%s577 + $0x70] sm:$0xf]
      %v607 = vld [vmem:[%s577 + $0x74] sm:$0xf]
      %v608 = vld [vmem:[%s577 + $0x78] sm:$0xf]
      %v609 = vld [vmem:[%s577 + $0x7c] sm:$0xf]
      %s610 = scalar_lea.vmem %s258, 8
      %v611 = vld [vmem:[%s610] sm:$0xf]
      %v612 = vld [vmem:[%s610 + $0x4] sm:$0x3]
      %v645 = vunpack.c.l.b16 %v578
      %v646 = vunpack.c.l.b16 %v579
      %v647 = vunpack.c.l.b16 %v580
      %v648 = vunpack.c.l.b16 %v581
      %v649 = vunpack.c.l.b16 %v582
      %v650 = vunpack.c.l.b16 %v583
      %v651 = vunpack.c.l.b16 %v584
      %v652 = vunpack.c.l.b16 %v585
      %v653 = vunpack.c.l.b16 %v586
      %v654 = vunpack.c.l.b16 %v587
      %v655 = vunpack.c.l.b16 %v588
      %v656 = vunpack.c.l.b16 %v589
      %v657 = vunpack.c.l.b16 %v590
      %v658 = vunpack.c.l.b16 %v591
      %v659 = vunpack.c.l.b16 %v592
      %v660 = vunpack.c.l.b16 %v593
      %v661 = vunpack.c.l.b16 %v594
      %v662 = vunpack.c.l.b16 %v595
      %v663 = vunpack.c.l.b16 %v596
      %v664 = vunpack.c.l.b16 %v597
      %v665 = vunpack.c.l.b16 %v598
      %v666 = vunpack.c.l.b16 %v599
      %v667 = vunpack.c.l.b16 %v600
      %v668 = vunpack.c.l.b16 %v601
      %v669 = vunpack.c.l.b16 %v602
      %v670 = vunpack.c.l.b16 %v603
      %v671 = vunpack.c.l.b16 %v604
      %v672 = vunpack.c.l.b16 %v605
      %v673 = vunpack.c.l.b16 %v606
      %v674 = vunpack.c.l.b16 %v607
      %v675 = vunpack.c.l.b16 %v608
      %v676 = vunpack.c.l.b16 %v609
      %v677 = vpack.c.b16 %v646, %v645
      %v678 = vpack.c.b16 %v648, %v647
      %v679 = vpack.c.b16 %v650, %v649
      %v680 = vpack.c.b16 %v652, %v651
      %v681 = vpack.c.b16 %v654, %v653
      %v682 = vpack.c.b16 %v656, %v655
      %v683 = vpack.c.b16 %v658, %v657
      %v684 = vpack.c.b16 %v660, %v659
      %v685 = vpack.c.b16 %v662, %v661
      %v686 = vpack.c.b16 %v664, %v663
      %v687 = vpack.c.b16 %v666, %v665
      %v688 = vpack.c.b16 %v668, %v667
      %v689 = vpack.c.b16 %v670, %v669
      %v690 = vpack.c.b16 %v672, %v671
      %v691 = vpack.c.b16 %v674, %v673
      %v692 = vpack.c.b16 %v676, %v675
      %v695 = vunpack.c.l.b16 %v611
      %v696 = vunpack.c.l.b16 %v612
      %v697 = vpack.c.b16 %v696, %v695
      %v699 = vsel %vm400, %v677, 0
      %v702 = vsel %vm400, %v678, 0
      %v705 = vsel %vm400, %v679, 0
      %v708 = vsel %vm400, %v680, 0
      %v711 = vsel %vm400, %v681, 0
      %v714 = vsel %vm400, %v682, 0
      %v717 = vsel %vm400, %v683, 0
      %v720 = vsel %vm400, %v684, 0
      %v723 = vsel %vm400, %v685, 0
      %v726 = vsel %vm400, %v686, 0
      %v729 = vsel %vm400, %v687, 0
      %v732 = vsel %vm400, %v688, 0
      %v735 = vsel %vm400, %v689, 0
      %v738 = vsel %vm400, %v690, 0
      %v741 = vsel %vm400, %v691, 0
      %v744 = vsel %vm400, %v692, 0
      %v747 = vsel %vm449, %v697, 0
      %749 = vmatpush.bf16.msra.mxu0 0
      %750 = vmatpush.bf16.msra.mxu0 0
      %751 = vmatpush.bf16.msra.mxu0 0
      %752 = vmatpush.bf16.msra.mxu0 0
      %753 = vmatpush.bf16.msra.mxu0 0
      %754 = vmatpush.bf16.msra.mxu0 0
      %755 = vmatpush.bf16.msra.mxu0 0
      %756 = vmatpush.bf16.msra.mxu0 %v747
      %757 = vmatmul.bf16.gmra.mxu0 %v699
      %v758 = vpop.f32.mrf.mxu0
      %v759 = vadd.f32 0.0, %v758
      %v760 = vpop.f32.mrf.mxu0
      %v761 = vadd.f32 0.0, %v760
      %762 = vmatmul.bf16.gmra.mxu0 %v702
      %v763 = vpop.f32.mrf.mxu0
      %v764 = vadd.f32 0.0, %v763
      %v765 = vpop.f32.mrf.mxu0
      %v766 = vadd.f32 0.0, %v765
      %767 = vmatmul.bf16.gmra.mxu0 %v705
      %v768 = vpop.f32.mrf.mxu0
      %v769 = vadd.f32 0.0, %v768
      %v770 = vpop.f32.mrf.mxu0
      %v771 = vadd.f32 0.0, %v770
      %772 = vmatmul.bf16.gmra.mxu0 %v708
      %v773 = vpop.f32.mrf.mxu0
      %v774 = vadd.f32 0.0, %v773
      %v775 = vpop.f32.mrf.mxu0
      %v776 = vadd.f32 0.0, %v775
      %777 = vmatmul.bf16.gmra.mxu0 %v711
      %v778 = vpop.f32.mrf.mxu0
      %v779 = vadd.f32 0.0, %v778
      %v780 = vpop.f32.mrf.mxu0
      %v781 = vadd.f32 0.0, %v780
      %782 = vmatmul.bf16.gmra.mxu0 %v714
      %v783 = vpop.f32.mrf.mxu0
      %v784 = vadd.f32 0.0, %v783
      %v785 = vpop.f32.mrf.mxu0
      %v786 = vadd.f32 0.0, %v785
      %787 = vmatmul.bf16.gmra.mxu0 %v717
      %v788 = vpop.f32.mrf.mxu0
      %v789 = vadd.f32 0.0, %v788
      %v790 = vpop.f32.mrf.mxu0
      %v791 = vadd.f32 0.0, %v790
      %792 = vmatmul.bf16.gmra.mxu0 %v720
      %v793 = vpop.f32.mrf.mxu0
      %v794 = vadd.f32 0.0, %v793
      %v795 = vpop.f32.mrf.mxu0
      %v796 = vadd.f32 0.0, %v795
      %797 = vmatmul.bf16.gmra.mxu0 %v723
      %v798 = vpop.f32.mrf.mxu0
      %v799 = vadd.f32 0.0, %v798
      %v800 = vpop.f32.mrf.mxu0
      %v801 = vadd.f32 0.0, %v800
      %802 = vmatmul.bf16.gmra.mxu0 %v726
      %v803 = vpop.f32.mrf.mxu0
      %v804 = vadd.f32 0.0, %v803
      %v805 = vpop.f32.mrf.mxu0
      %v806 = vadd.f32 0.0, %v805
      %807 = vmatmul.bf16.gmra.mxu0 %v729
      %v808 = vpop.f32.mrf.mxu0
      %v809 = vadd.f32 0.0, %v808
      %v810 = vpop.f32.mrf.mxu0
      %v811 = vadd.f32 0.0, %v810
      %812 = vmatmul.bf16.gmra.mxu0 %v732
      %v813 = vpop.f32.mrf.mxu0
      %v814 = vadd.f32 0.0, %v813
      %v815 = vpop.f32.mrf.mxu0
      %v816 = vadd.f32 0.0, %v815
      %817 = vmatmul.bf16.gmra.mxu0 %v735
      %v818 = vpop.f32.mrf.mxu0
      %v819 = vadd.f32 0.0, %v818
      %v820 = vpop.f32.mrf.mxu0
      %v821 = vadd.f32 0.0, %v820
      %822 = vmatmul.bf16.gmra.mxu0 %v738
      %v823 = vpop.f32.mrf.mxu0
      %v824 = vadd.f32 0.0, %v823
      %v825 = vpop.f32.mrf.mxu0
      %v826 = vadd.f32 0.0, %v825
      %827 = vmatmul.bf16.gmra.mxu0 %v741
      %v828 = vpop.f32.mrf.mxu0
      %v829 = vadd.f32 0.0, %v828
      %v830 = vpop.f32.mrf.mxu0
      %v831 = vadd.f32 0.0, %v830
      %832 = vmatmul.bf16.gmra.mxu0 %v744
      %v833 = vpop.f32.mrf.mxu0
      %v834 = vadd.f32 0.0, %v833
      %v835 = vpop.f32.mrf.mxu0
      %v836 = vadd.f32 0.0, %v835
      %837 = vdwg.mxu0
      %v838 = vld [vmem:[#allocation2] sm:$0xff]
      %v839 = vld [vmem:[#allocation2 + $0x8] sm:$0xff]
      %v840 = vld [vmem:[#allocation2 + $0x10] sm:$0xff]
      %v841 = vld [vmem:[#allocation2 + $0x18] sm:$0xff]
      %v842 = vld [vmem:[#allocation2 + $0x20] sm:$0xff]
      %v843 = vld [vmem:[#allocation2 + $0x28] sm:$0xff]
      %v844 = vld [vmem:[#allocation2 + $0x30] sm:$0xff]
      %v845 = vld [vmem:[#allocation2 + $0x38] sm:$0xff]
      %v846 = vld [vmem:[#allocation2 + $0x40] sm:$0xff]
      %v847 = vld [vmem:[#allocation2 + $0x48] sm:$0xff]
      %v848 = vld [vmem:[#allocation2 + $0x50] sm:$0xff]
      %v849 = vld [vmem:[#allocation2 + $0x58] sm:$0xff]
      %v850 = vld [vmem:[#allocation2 + $0x60] sm:$0xff]
      %v851 = vld [vmem:[#allocation2 + $0x68] sm:$0xff]
      %v852 = vld [vmem:[#allocation2 + $0x70] sm:$0xff]
      %v853 = vld [vmem:[#allocation2 + $0x78] sm:$0xff]
      %v854 = vld [vmem:[#allocation2 + $0x80] sm:$0xff]
      %v855 = vld [vmem:[#allocation2 + $0x88] sm:$0xff]
      %v856 = vld [vmem:[#allocation2 + $0x90] sm:$0xff]
      %v857 = vld [vmem:[#allocation2 + $0x98] sm:$0xff]
      %v858 = vld [vmem:[#allocation2 + $0xa0] sm:$0xff]
      %v859 = vld [vmem:[#allocation2 + $0xa8] sm:$0xff]
      %v860 = vld [vmem:[#allocation2 + $0xb0] sm:$0xff]
      %v861 = vld [vmem:[#allocation2 + $0xb8] sm:$0xff]
      %v862 = vld [vmem:[#allocation2 + $0xc0] sm:$0xff]
      %v863 = vld [vmem:[#allocation2 + $0xc8] sm:$0xff]
      %v864 = vld [vmem:[#allocation2 + $0xd0] sm:$0xff]
      %v865 = vld [vmem:[#allocation2 + $0xd8] sm:$0xff]
      %v866 = vld [vmem:[#allocation2 + $0xe0] sm:$0xff]
      %v867 = vld [vmem:[#allocation2 + $0xe8] sm:$0xff]
      %v868 = vld [vmem:[#allocation2 + $0xf0] sm:$0xff]
      %v869 = vld [vmem:[#allocation2 + $0xf8] sm:$0xff]
      %v870 = vadd.f32 %v838, %v759
      %v871 = vadd.f32 %v839, %v761
      %v872 = vadd.f32 %v840, %v764
      %v873 = vadd.f32 %v841, %v766
      %v874 = vadd.f32 %v842, %v769
      %v875 = vadd.f32 %v843, %v771
      %v876 = vadd.f32 %v844, %v774
      %v877 = vadd.f32 %v845, %v776
      %v878 = vadd.f32 %v846, %v779
      %v879 = vadd.f32 %v847, %v781
      %v880 = vadd.f32 %v848, %v784
      %v881 = vadd.f32 %v849, %v786
      %v882 = vadd.f32 %v850, %v789
      %v883 = vadd.f32 %v851, %v791
      %v884 = vadd.f32 %v852, %v794
      %v885 = vadd.f32 %v853, %v796
      %v886 = vadd.f32 %v854, %v799
      %v887 = vadd.f32 %v855, %v801
      %v888 = vadd.f32 %v856, %v804
      %v889 = vadd.f32 %v857, %v806
      %v890 = vadd.f32 %v858, %v809
      %v891 = vadd.f32 %v859, %v811
      %v892 = vadd.f32 %v860, %v814
      %v893 = vadd.f32 %v861, %v816
      %v894 = vadd.f32 %v862, %v819
      %v895 = vadd.f32 %v863, %v821
      %v896 = vadd.f32 %v864, %v824
      %v897 = vadd.f32 %v865, %v826
      %v898 = vadd.f32 %v866, %v829
      %v899 = vadd.f32 %v867, %v831
      %v900 = vadd.f32 %v868, %v834
      %v901 = vadd.f32 %v869, %v836
      %902 = vst [vmem:[#allocation2] sm:$0xff] %v870
      %903 = vst [vmem:[#allocation2 + $0x8] sm:$0xff] %v871
      %904 = vst [vmem:[#allocation2 + $0x10] sm:$0xff] %v872
      %905 = vst [vmem:[#allocation2 + $0x18] sm:$0xff] %v873
      %906 = vst [vmem:[#allocation2 + $0x20] sm:$0xff] %v874
      %907 = vst [vmem:[#allocation2 + $0x28] sm:$0xff] %v875
      %908 = vst [vmem:[#allocation2 + $0x30] sm:$0xff] %v876
      %909 = vst [vmem:[#allocation2 + $0x38] sm:$0xff] %v877
      %910 = vst [vmem:[#allocation2 + $0x40] sm:$0xff] %v878
      %911 = vst [vmem:[#allocation2 + $0x48] sm:$0xff] %v879
      %912 = vst [vmem:[#allocation2 + $0x50] sm:$0xff] %v880
      %913 = vst [vmem:[#allocation2 + $0x58] sm:$0xff] %v881
      %914 = vst [vmem:[#allocation2 + $0x60] sm:$0xff] %v882
      %915 = vst [vmem:[#allocation2 + $0x68] sm:$0xff] %v883
      %916 = vst [vmem:[#allocation2 + $0x70] sm:$0xff] %v884
      %917 = vst [vmem:[#allocation2 + $0x78] sm:$0xff] %v885
      %918 = vst [vmem:[#allocation2 + $0x80] sm:$0xff] %v886
      %919 = vst [vmem:[#allocation2 + $0x88] sm:$0xff] %v887
      %920 = vst [vmem:[#allocation2 + $0x90] sm:$0xff] %v888
      %921 = vst [vmem:[#allocation2 + $0x98] sm:$0xff] %v889
      %922 = vst [vmem:[#allocation2 + $0xa0] sm:$0xff] %v890
      %923 = vst [vmem:[#allocation2 + $0xa8] sm:$0xff] %v891
      %924 = vst [vmem:[#allocation2 + $0xb0] sm:$0xff] %v892
      %925 = vst [vmem:[#allocation2 + $0xb8] sm:$0xff] %v893
      %926 = vst [vmem:[#allocation2 + $0xc0] sm:$0xff] %v894
      %927 = vst [vmem:[#allocation2 + $0xc8] sm:$0xff] %v895
      %928 = vst [vmem:[#allocation2 + $0xd0] sm:$0xff] %v896
      %929 = vst [vmem:[#allocation2 + $0xd8] sm:$0xff] %v897
      %930 = vst [vmem:[#allocation2 + $0xe0] sm:$0xff] %v898
      %931 = vst [vmem:[#allocation2 + $0xe8] sm:$0xff] %v899
      %932 = vst [vmem:[#allocation2 + $0xf0] sm:$0xff] %v900
      %933 = vst [vmem:[#allocation2 + $0xf8] sm:$0xff] %v901
      %s934 = sadd.s32 %s277, 2
      %s935 = smul.u32 %s934, 2
      %s936 = smul.addr %s935, 4
      %s937 = scalar_lea.vmem %s254, %s936
      %v938 = vld [vmem:[%s937] sm:$0xf]
      %v939 = vld [vmem:[%s937 + $0x4] sm:$0xf]
      %v940 = vld [vmem:[%s937 + $0x8] sm:$0xf]
      %v941 = vld [vmem:[%s937 + $0xc] sm:$0xf]
      %v942 = vld [vmem:[%s937 + $0x10] sm:$0xf]
      %v943 = vld [vmem:[%s937 + $0x14] sm:$0xf]
      %v944 = vld [vmem:[%s937 + $0x18] sm:$0xf]
      %v945 = vld [vmem:[%s937 + $0x1c] sm:$0xf]
      %v946 = vld [vmem:[%s937 + $0x20] sm:$0xf]
      %v947 = vld [vmem:[%s937 + $0x24] sm:$0xf]
      %v948 = vld [vmem:[%s937 + $0x28] sm:$0xf]
      %v949 = vld [vmem:[%s937 + $0x2c] sm:$0xf]
      %v950 = vld [vmem:[%s937 + $0x30] sm:$0xf]
      %v951 = vld [vmem:[%s937 + $0x34] sm:$0xf]
      %v952 = vld [vmem:[%s937 + $0x38] sm:$0xf]
      %v953 = vld [vmem:[%s937 + $0x3c] sm:$0xf]
      %v954 = vld [vmem:[%s937 + $0x40] sm:$0xf]
      %v955 = vld [vmem:[%s937 + $0x44] sm:$0xf]
      %v956 = vld [vmem:[%s937 + $0x48] sm:$0xf]
      %v957 = vld [vmem:[%s937 + $0x4c] sm:$0xf]
      %v958 = vld [vmem:[%s937 + $0x50] sm:$0xf]
      %v959 = vld [vmem:[%s937 + $0x54] sm:$0xf]
      %v960 = vld [vmem:[%s937 + $0x58] sm:$0xf]
      %v961 = vld [vmem:[%s937 + $0x5c] sm:$0xf]
      %v962 = vld [vmem:[%s937 + $0x60] sm:$0xf]
      %v963 = vld [vmem:[%s937 + $0x64] sm:$0xf]
      %v964 = vld [vmem:[%s937 + $0x68] sm:$0xf]
      %v965 = vld [vmem:[%s937 + $0x6c] sm:$0xf]
      %v966 = vld [vmem:[%s937 + $0x70] sm:$0xf]
      %v967 = vld [vmem:[%s937 + $0x74] sm:$0xf]
      %v968 = vld [vmem:[%s937 + $0x78] sm:$0xf]
      %v969 = vld [vmem:[%s937 + $0x7c] sm:$0xf]
      %s970 = scalar_lea.vmem %s258, 16
      %v971 = vld [vmem:[%s970] sm:$0xf]
      %v972 = vld [vmem:[%s970 + $0x4] sm:$0x3]
      %v1005 = vunpack.c.l.b16 %v938
      %v1006 = vunpack.c.l.b16 %v939
      %v1007 = vunpack.c.l.b16 %v940
      %v1008 = vunpack.c.l.b16 %v941
      %v1009 = vunpack.c.l.b16 %v942
      %v1010 = vunpack.c.l.b16 %v943
      %v1011 = vunpack.c.l.b16 %v944
      %v1012 = vunpack.c.l.b16 %v945
      %v1013 = vunpack.c.l.b16 %v946
      %v1014 = vunpack.c.l.b16 %v947
      %v1015 = vunpack.c.l.b16 %v948
      %v1016 = vunpack.c.l.b16 %v949
      %v1017 = vunpack.c.l.b16 %v950
      %v1018 = vunpack.c.l.b16 %v951
      %v1019 = vunpack.c.l.b16 %v952
      %v1020 = vunpack.c.l.b16 %v953
      %v1021 = vunpack.c.l.b16 %v954
      %v1022 = vunpack.c.l.b16 %v955
      %v1023 = vunpack.c.l.b16 %v956
      %v1024 = vunpack.c.l.b16 %v957
      %v1025 = vunpack.c.l.b16 %v958
      %v1026 = vunpack.c.l.b16 %v959
      %v1027 = vunpack.c.l.b16 %v960
      %v1028 = vunpack.c.l.b16 %v961
      %v1029 = vunpack.c.l.b16 %v962
      %v1030 = vunpack.c.l.b16 %v963
      %v1031 = vunpack.c.l.b16 %v964
      %v1032 = vunpack.c.l.b16 %v965
      %v1033 = vunpack.c.l.b16 %v966
      %v1034 = vunpack.c.l.b16 %v967
      %v1035 = vunpack.c.l.b16 %v968
      %v1036 = vunpack.c.l.b16 %v969
      %v1037 = vpack.c.b16 %v1006, %v1005
      %v1038 = vpack.c.b16 %v1008, %v1007
      %v1039 = vpack.c.b16 %v1010, %v1009
      %v1040 = vpack.c.b16 %v1012, %v1011
      %v1041 = vpack.c.b16 %v1014, %v1013
      %v1042 = vpack.c.b16 %v1016, %v1015
      %v1043 = vpack.c.b16 %v1018, %v1017
      %v1044 = vpack.c.b16 %v1020, %v1019
      %v1045 = vpack.c.b16 %v1022, %v1021
      %v1046 = vpack.c.b16 %v1024, %v1023
      %v1047 = vpack.c.b16 %v1026, %v1025
      %v1048 = vpack.c.b16 %v1028, %v1027
      %v1049 = vpack.c.b16 %v1030, %v1029
      %v1050 = vpack.c.b16 %v1032, %v1031
      %v1051 = vpack.c.b16 %v1034, %v1033
      %v1052 = vpack.c.b16 %v1036, %v1035
      %v1055 = vunpack.c.l.b16 %v971
      %v1056 = vunpack.c.l.b16 %v972
      %v1057 = vpack.c.b16 %v1056, %v1055
      %v1059 = vsel %vm400, %v1037, 0
      %v1062 = vsel %vm400, %v1038, 0
      %v1065 = vsel %vm400, %v1039, 0
      %v1068 = vsel %vm400, %v1040, 0
      %v1071 = vsel %vm400, %v1041, 0
      %v1074 = vsel %vm400, %v1042, 0
      %v1077 = vsel %vm400, %v1043, 0
      %v1080 = vsel %vm400, %v1044, 0
      %v1083 = vsel %vm400, %v1045, 0
      %v1086 = vsel %vm400, %v1046, 0
      %v1089 = vsel %vm400, %v1047, 0
      %v1092 = vsel %vm400, %v1048, 0
      %v1095 = vsel %vm400, %v1049, 0
      %v1098 = vsel %vm400, %v1050, 0
      %v1101 = vsel %vm400, %v1051, 0
      %v1104 = vsel %vm400, %v1052, 0
      %v1107 = vsel %vm449, %v1057, 0
      %1109 = vmatpush.bf16.msra.mxu0 0
      %1110 = vmatpush.bf16.msra.mxu0 0
      %1111 = vmatpush.bf16.msra.mxu0 0
      %1112 = vmatpush.bf16.msra.mxu0 0
      %1113 = vmatpush.bf16.msra.mxu0 0
      %1114 = vmatpush.bf16.msra.mxu0 0
      %1115 = vmatpush.bf16.msra.mxu0 0
      %1116 = vmatpush.bf16.msra.mxu0 %v1107
      %1117 = vmatmul.bf16.gmra.mxu0 %v1059
      %v1118 = vpop.f32.mrf.mxu0
      %v1119 = vadd.f32 0.0, %v1118
      %v1120 = vpop.f32.mrf.mxu0
      %v1121 = vadd.f32 0.0, %v1120
      %1122 = vmatmul.bf16.gmra.mxu0 %v1062
      %v1123 = vpop.f32.mrf.mxu0
      %v1124 = vadd.f32 0.0, %v1123
      %v1125 = vpop.f32.mrf.mxu0
      %v1126 = vadd.f32 0.0, %v1125
      %1127 = vmatmul.bf16.gmra.mxu0 %v1065
      %v1128 = vpop.f32.mrf.mxu0
      %v1129 = vadd.f32 0.0, %v1128
      %v1130 = vpop.f32.mrf.mxu0
      %v1131 = vadd.f32 0.0, %v1130
      %1132 = vmatmul.bf16.gmra.mxu0 %v1068
      %v1133 = vpop.f32.mrf.mxu0
      %v1134 = vadd.f32 0.0, %v1133
      %v1135 = vpop.f32.mrf.mxu0
      %v1136 = vadd.f32 0.0, %v1135
      %1137 = vmatmul.bf16.gmra.mxu0 %v1071
      %v1138 = vpop.f32.mrf.mxu0
      %v1139 = vadd.f32 0.0, %v1138
      %v1140 = vpop.f32.mrf.mxu0
      %v1141 = vadd.f32 0.0, %v1140
      %1142 = vmatmul.bf16.gmra.mxu0 %v1074
      %v1143 = vpop.f32.mrf.mxu0
      %v1144 = vadd.f32 0.0, %v1143
      %v1145 = vpop.f32.mrf.mxu0
      %v1146 = vadd.f32 0.0, %v1145
      %1147 = vmatmul.bf16.gmra.mxu0 %v1077
      %v1148 = vpop.f32.mrf.mxu0
      %v1149 = vadd.f32 0.0, %v1148
      %v1150 = vpop.f32.mrf.mxu0
      %v1151 = vadd.f32 0.0, %v1150
      %1152 = vmatmul.bf16.gmra.mxu0 %v1080
      %v1153 = vpop.f32.mrf.mxu0
      %v1154 = vadd.f32 0.0, %v1153
      %v1155 = vpop.f32.mrf.mxu0
      %v1156 = vadd.f32 0.0, %v1155
      %1157 = vmatmul.bf16.gmra.mxu0 %v1083
      %v1158 = vpop.f32.mrf.mxu0
      %v1159 = vadd.f32 0.0, %v1158
      %v1160 = vpop.f32.mrf.mxu0
      %v1161 = vadd.f32 0.0, %v1160
      %1162 = vmatmul.bf16.gmra.mxu0 %v1086
      %v1163 = vpop.f32.mrf.mxu0
      %v1164 = vadd.f32 0.0, %v1163
      %v1165 = vpop.f32.mrf.mxu0
      %v1166 = vadd.f32 0.0, %v1165
      %1167 = vmatmul.bf16.gmra.mxu0 %v1089
      %v1168 = vpop.f32.mrf.mxu0
      %v1169 = vadd.f32 0.0, %v1168
      %v1170 = vpop.f32.mrf.mxu0
      %v1171 = vadd.f32 0.0, %v1170
      %1172 = vmatmul.bf16.gmra.mxu0 %v1092
      %v1173 = vpop.f32.mrf.mxu0
      %v1174 = vadd.f32 0.0, %v1173
      %v1175 = vpop.f32.mrf.mxu0
      %v1176 = vadd.f32 0.0, %v1175
      %1177 = vmatmul.bf16.gmra.mxu0 %v1095
      %v1178 = vpop.f32.mrf.mxu0
      %v1179 = vadd.f32 0.0, %v1178
      %v1180 = vpop.f32.mrf.mxu0
      %v1181 = vadd.f32 0.0, %v1180
      %1182 = vmatmul.bf16.gmra.mxu0 %v1098
      %v1183 = vpop.f32.mrf.mxu0
      %v1184 = vadd.f32 0.0, %v1183
      %v1185 = vpop.f32.mrf.mxu0
      %v1186 = vadd.f32 0.0, %v1185
      %1187 = vmatmul.bf16.gmra.mxu0 %v1101
      %v1188 = vpop.f32.mrf.mxu0
      %v1189 = vadd.f32 0.0, %v1188
      %v1190 = vpop.f32.mrf.mxu0
      %v1191 = vadd.f32 0.0, %v1190
      %1192 = vmatmul.bf16.gmra.mxu0 %v1104
      %v1193 = vpop.f32.mrf.mxu0
      %v1194 = vadd.f32 0.0, %v1193
      %v1195 = vpop.f32.mrf.mxu0
      %v1196 = vadd.f32 0.0, %v1195
      %1197 = vdwg.mxu0
      %v1198 = vld [vmem:[#allocation2] sm:$0xff]
      %v1199 = vld [vmem:[#allocation2 + $0x8] sm:$0xff]
      %v1200 = vld [vmem:[#allocation2 + $0x10] sm:$0xff]
      %v1201 = vld [vmem:[#allocation2 + $0x18] sm:$0xff]
      %v1202 = vld [vmem:[#allocation2 + $0x20] sm:$0xff]
      %v1203 = vld [vmem:[#allocation2 + $0x28] sm:$0xff]
      %v1204 = vld [vmem:[#allocation2 + $0x30] sm:$0xff]
      %v1205 = vld [vmem:[#allocation2 + $0x38] sm:$0xff]
      %v1206 = vld [vmem:[#allocation2 + $0x40] sm:$0xff]
      %v1207 = vld [vmem:[#allocation2 + $0x48] sm:$0xff]
      %v1208 = vld [vmem:[#allocation2 + $0x50] sm:$0xff]
      %v1209 = vld [vmem:[#allocation2 + $0x58] sm:$0xff]
      %v1210 = vld [vmem:[#allocation2 + $0x60] sm:$0xff]
      %v1211 = vld [vmem:[#allocation2 + $0x68] sm:$0xff]
      %v1212 = vld [vmem:[#allocation2 + $0x70] sm:$0xff]
      %v1213 = vld [vmem:[#allocation2 + $0x78] sm:$0xff]
      %v1214 = vld [vmem:[#allocation2 + $0x80] sm:$0xff]
      %v1215 = vld [vmem:[#allocation2 + $0x88] sm:$0xff]
      %v1216 = vld [vmem:[#allocation2 + $0x90] sm:$0xff]
      %v1217 = vld [vmem:[#allocation2 + $0x98] sm:$0xff]
      %v1218 = vld [vmem:[#allocation2 + $0xa0] sm:$0xff]
      %v1219 = vld [vmem:[#allocation2 + $0xa8] sm:$0xff]
      %v1220 = vld [vmem:[#allocation2 + $0xb0] sm:$0xff]
      %v1221 = vld [vmem:[#allocation2 + $0xb8] sm:$0xff]
      %v1222 = vld [vmem:[#allocation2 + $0xc0] sm:$0xff]
      %v1223 = vld [vmem:[#allocation2 + $0xc8] sm:$0xff]
      %v1224 = vld [vmem:[#allocation2 + $0xd0] sm:$0xff]
      %v1225 = vld [vmem:[#allocation2 + $0xd8] sm:$0xff]
      %v1226 = vld [vmem:[#allocation2 + $0xe0] sm:$0xff]
      %v1227 = vld [vmem:[#allocation2 + $0xe8] sm:$0xff]
      %v1228 = vld [vmem:[#allocation2 + $0xf0] sm:$0xff]
      %v1229 = vld [vmem:[#allocation2 + $0xf8] sm:$0xff]
      %v1230 = vadd.f32 %v1198, %v1119
      %v1231 = vadd.f32 %v1199, %v1121
      %v1232 = vadd.f32 %v1200, %v1124
      %v1233 = vadd.f32 %v1201, %v1126
      %v1234 = vadd.f32 %v1202, %v1129
      %v1235 = vadd.f32 %v1203, %v1131
      %v1236 = vadd.f32 %v1204, %v1134
      %v1237 = vadd.f32 %v1205, %v1136
      %v1238 = vadd.f32 %v1206, %v1139
      %v1239 = vadd.f32 %v1207, %v1141
      %v1240 = vadd.f32 %v1208, %v1144
      %v1241 = vadd.f32 %v1209, %v1146
      %v1242 = vadd.f32 %v1210, %v1149
      %v1243 = vadd.f32 %v1211, %v1151
      %v1244 = vadd.f32 %v1212, %v1154
      %v1245 = vadd.f32 %v1213, %v1156
      %v1246 = vadd.f32 %v1214, %v1159
      %v1247 = vadd.f32 %v1215, %v1161
      %v1248 = vadd.f32 %v1216, %v1164
      %v1249 = vadd.f32 %v1217, %v1166
      %v1250 = vadd.f32 %v1218, %v1169
      %v1251 = vadd.f32 %v1219, %v1171
      %v1252 = vadd.f32 %v1220, %v1174
      %v1253 = vadd.f32 %v1221, %v1176
      %v1254 = vadd.f32 %v1222, %v1179
      %v1255 = vadd.f32 %v1223, %v1181
      %v1256 = vadd.f32 %v1224, %v1184
      %v1257 = vadd.f32 %v1225, %v1186
      %v1258 = vadd.f32 %v1226, %v1189
      %v1259 = vadd.f32 %v1227, %v1191
      %v1260 = vadd.f32 %v1228, %v1194
      %v1261 = vadd.f32 %v1229, %v1196
      %1262 = vst [vmem:[#allocation2] sm:$0xff] %v1230
      %1263 = vst [vmem:[#allocation2 + $0x8] sm:$0xff] %v1231
      %1264 = vst [vmem:[#allocation2 + $0x10] sm:$0xff] %v1232
      %1265 = vst [vmem:[#allocation2 + $0x18] sm:$0xff] %v1233
      %1266 = vst [vmem:[#allocation2 + $0x20] sm:$0xff] %v1234
      %1267 = vst [vmem:[#allocation2 + $0x28] sm:$0xff] %v1235
      %1268 = vst [vmem:[#allocation2 + $0x30] sm:$0xff] %v1236
      %1269 = vst [vmem:[#allocation2 + $0x38] sm:$0xff] %v1237
      %1270 = vst [vmem:[#allocation2 + $0x40] sm:$0xff] %v1238
      %1271 = vst [vmem:[#allocation2 + $0x48] sm:$0xff] %v1239
      %1272 = vst [vmem:[#allocation2 + $0x50] sm:$0xff] %v1240
      %1273 = vst [vmem:[#allocation2 + $0x58] sm:$0xff] %v1241
      %1274 = vst [vmem:[#allocation2 + $0x60] sm:$0xff] %v1242
      %1275 = vst [vmem:[#allocation2 + $0x68] sm:$0xff] %v1243
      %1276 = vst [vmem:[#allocation2 + $0x70] sm:$0xff] %v1244
      %1277 = vst [vmem:[#allocation2 + $0x78] sm:$0xff] %v1245
      %1278 = vst [vmem:[#allocation2 + $0x80] sm:$0xff] %v1246
      %1279 = vst [vmem:[#allocation2 + $0x88] sm:$0xff] %v1247
      %1280 = vst [vmem:[#allocation2 + $0x90] sm:$0xff] %v1248
      %1281 = vst [vmem:[#allocation2 + $0x98] sm:$0xff] %v1249
      %1282 = vst [vmem:[#allocation2 + $0xa0] sm:$0xff] %v1250
      %1283 = vst [vmem:[#allocation2 + $0xa8] sm:$0xff] %v1251
      %1284 = vst [vmem:[#allocation2 + $0xb0] sm:$0xff] %v1252
      %1285 = vst [vmem:[#allocation2 + $0xb8] sm:$0xff] %v1253
      %1286 = vst [vmem:[#allocation2 + $0xc0] sm:$0xff] %v1254
      %1287 = vst [vmem:[#allocation2 + $0xc8] sm:$0xff] %v1255
      %1288 = vst [vmem:[#allocation2 + $0xd0] sm:$0xff] %v1256
      %1289 = vst [vmem:[#allocation2 + $0xd8] sm:$0xff] %v1257
      %1290 = vst [vmem:[#allocation2 + $0xe0] sm:$0xff] %v1258
      %1291 = vst [vmem:[#allocation2 + $0xe8] sm:$0xff] %v1259
      %1292 = vst [vmem:[#allocation2 + $0xf0] sm:$0xff] %v1260
      %1293 = vst [vmem:[#allocation2 + $0xf8] sm:$0xff] %v1261
      %v1294 = vld [vmem:[#allocation2] sm:$0xff]
      %v1295 = vld [vmem:[#allocation2 + $0x8] sm:$0xff]
      %v1296 = vld [vmem:[#allocation2 + $0x10] sm:$0xff]
      %v1297 = vld [vmem:[#allocation2 + $0x18] sm:$0xff]
      %v1298 = vld [vmem:[#allocation2 + $0x20] sm:$0xff]
      %v1299 = vld [vmem:[#allocation2 + $0x28] sm:$0xff]
      %v1300 = vld [vmem:[#allocation2 + $0x30] sm:$0xff]
      %v1301 = vld [vmem:[#allocation2 + $0x38] sm:$0xff]
      %v1302 = vld [vmem:[#allocation2 + $0x40] sm:$0xff]
      %v1303 = vld [vmem:[#allocation2 + $0x48] sm:$0xff]
      %v1304 = vld [vmem:[#allocation2 + $0x50] sm:$0xff]
      %v1305 = vld [vmem:[#allocation2 + $0x58] sm:$0xff]
      %v1306 = vld [vmem:[#allocation2 + $0x60] sm:$0xff]
      %v1307 = vld [vmem:[#allocation2 + $0x68] sm:$0xff]
      %v1308 = vld [vmem:[#allocation2 + $0x70] sm:$0xff]
      %v1309 = vld [vmem:[#allocation2 + $0x78] sm:$0xff]
      %v1310 = vld [vmem:[#allocation2 + $0x80] sm:$0xff]
      %v1311 = vld [vmem:[#allocation2 + $0x88] sm:$0xff]
      %v1312 = vld [vmem:[#allocation2 + $0x90] sm:$0xff]
      %v1313 = vld [vmem:[#allocation2 + $0x98] sm:$0xff]
      %v1314 = vld [vmem:[#allocation2 + $0xa0] sm:$0xff]
      %v1315 = vld [vmem:[#allocation2 + $0xa8] sm:$0xff]
      %v1316 = vld [vmem:[#allocation2 + $0xb0] sm:$0xff]
      %v1317 = vld [vmem:[#allocation2 + $0xb8] sm:$0xff]
      %v1318 = vld [vmem:[#allocation2 + $0xc0] sm:$0xff]
      %v1319 = vld [vmem:[#allocation2 + $0xc8] sm:$0xff]
      %v1320 = vld [vmem:[#allocation2 + $0xd0] sm:$0xff]
      %v1321 = vld [vmem:[#allocation2 + $0xd8] sm:$0xff]
      %v1322 = vld [vmem:[#allocation2 + $0xe0] sm:$0xff]
      %v1323 = vld [vmem:[#allocation2 + $0xe8] sm:$0xff]
      %v1324 = vld [vmem:[#allocation2 + $0xf0] sm:$0xff]
      %v1325 = vld [vmem:[#allocation2 + $0xf8] sm:$0xff]
      %v1326 = vld [vmem:[%s261] sm:$0x1]
      %v1328 = vperm.slane %v1326, 0
      %v1330 = vmul.f32 %v1294, %v1328
      %v1331 = vmul.f32 %v1295, %v1328
      %v1332 = vmul.f32 %v1296, %v1328
      %v1333 = vmul.f32 %v1297, %v1328
      %v1334 = vmul.f32 %v1298, %v1328
      %v1335 = vmul.f32 %v1299, %v1328
      %v1336 = vmul.f32 %v1300, %v1328
      %v1337 = vmul.f32 %v1301, %v1328
      %v1338 = vmul.f32 %v1302, %v1328
      %v1339 = vmul.f32 %v1303, %v1328
      %v1340 = vmul.f32 %v1304, %v1328
      %v1341 = vmul.f32 %v1305, %v1328
      %v1342 = vmul.f32 %v1306, %v1328
      %v1343 = vmul.f32 %v1307, %v1328
      %v1344 = vmul.f32 %v1308, %v1328
      %v1345 = vmul.f32 %v1309, %v1328
      %v1346 = vmul.f32 %v1310, %v1328
      %v1347 = vmul.f32 %v1311, %v1328
      %v1348 = vmul.f32 %v1312, %v1328
      %v1349 = vmul.f32 %v1313, %v1328
      %v1350 = vmul.f32 %v1314, %v1328
      %v1351 = vmul.f32 %v1315, %v1328
      %v1352 = vmul.f32 %v1316, %v1328
      %v1353 = vmul.f32 %v1317, %v1328
      %v1354 = vmul.f32 %v1318, %v1328
      %v1355 = vmul.f32 %v1319, %v1328
      %v1356 = vmul.f32 %v1320, %v1328
      %v1357 = vmul.f32 %v1321, %v1328
      %v1358 = vmul.f32 %v1322, %v1328
      %v1359 = vmul.f32 %v1323, %v1328
      %v1360 = vmul.f32 %v1324, %v1328
      %v1361 = vmul.f32 %v1325, %v1328
      %v1362 = vld [vmem:[%s264] sm:$0x1]
      %v1364 = vperm.slane %v1362, 0
      %v1366 = vadd.f32 %v1330, %v1364
      %v1367 = vadd.f32 %v1331, %v1364
      %v1368 = vadd.f32 %v1332, %v1364
      %v1369 = vadd.f32 %v1333, %v1364
      %v1370 = vadd.f32 %v1334, %v1364
      %v1371 = vadd.f32 %v1335, %v1364
      %v1372 = vadd.f32 %v1336, %v1364
      %v1373 = vadd.f32 %v1337, %v1364
      %v1374 = vadd.f32 %v1338, %v1364
      %v1375 = vadd.f32 %v1339, %v1364
      %v1376 = vadd.f32 %v1340, %v1364
      %v1377 = vadd.f32 %v1341, %v1364
      %v1378 = vadd.f32 %v1342, %v1364
      %v1379 = vadd.f32 %v1343, %v1364
      %v1380 = vadd.f32 %v1344, %v1364
      %v1381 = vadd.f32 %v1345, %v1364
      %v1382 = vadd.f32 %v1346, %v1364
      %v1383 = vadd.f32 %v1347, %v1364
      %v1384 = vadd.f32 %v1348, %v1364
      %v1385 = vadd.f32 %v1349, %v1364
      %v1386 = vadd.f32 %v1350, %v1364
      %v1387 = vadd.f32 %v1351, %v1364
      %v1388 = vadd.f32 %v1352, %v1364
      %v1389 = vadd.f32 %v1353, %v1364
      %v1390 = vadd.f32 %v1354, %v1364
      %v1391 = vadd.f32 %v1355, %v1364
      %v1392 = vadd.f32 %v1356, %v1364
      %v1393 = vadd.f32 %v1357, %v1364
      %v1394 = vadd.f32 %v1358, %v1364
      %v1395 = vadd.f32 %v1359, %v1364
      %v1396 = vadd.f32 %v1360, %v1364
      %v1397 = vadd.f32 %v1361, %v1364
      %v1398 = vmax.f32 %v1366, 0.0
      %v1399 = vmax.f32 %v1367, 0.0
      %v1400 = vmax.f32 %v1368, 0.0
      %v1401 = vmax.f32 %v1369, 0.0
      %v1402 = vmax.f32 %v1370, 0.0
      %v1403 = vmax.f32 %v1371, 0.0
      %v1404 = vmax.f32 %v1372, 0.0
      %v1405 = vmax.f32 %v1373, 0.0
      %v1406 = vmax.f32 %v1374, 0.0
      %v1407 = vmax.f32 %v1375, 0.0
      %v1408 = vmax.f32 %v1376, 0.0
      %v1409 = vmax.f32 %v1377, 0.0
      %v1410 = vmax.f32 %v1378, 0.0
      %v1411 = vmax.f32 %v1379, 0.0
      %v1412 = vmax.f32 %v1380, 0.0
      %v1413 = vmax.f32 %v1381, 0.0
      %v1414 = vmax.f32 %v1382, 0.0
      %v1415 = vmax.f32 %v1383, 0.0
      %v1416 = vmax.f32 %v1384, 0.0
      %v1417 = vmax.f32 %v1385, 0.0
      %v1418 = vmax.f32 %v1386, 0.0
      %v1419 = vmax.f32 %v1387, 0.0
      %v1420 = vmax.f32 %v1388, 0.0
      %v1421 = vmax.f32 %v1389, 0.0
      %v1422 = vmax.f32 %v1390, 0.0
      %v1423 = vmax.f32 %v1391, 0.0
      %v1424 = vmax.f32 %v1392, 0.0
      %v1425 = vmax.f32 %v1393, 0.0
      %v1426 = vmax.f32 %v1394, 0.0
      %v1427 = vmax.f32 %v1395, 0.0
      %v1428 = vmax.f32 %v1396, 0.0
      %v1429 = vmax.f32 %v1397, 0.0
      %1430 = vst [vmem:[%s273] sm:$0xff] %v1398
      %1431 = vst [vmem:[%s273 + $0x8] sm:$0xff] %v1399
      %1432 = vst [vmem:[%s273 + $0x10] sm:$0xff] %v1400
      %1433 = vst [vmem:[%s273 + $0x18] sm:$0xff] %v1401
      %1434 = vst [vmem:[%s273 + $0x20] sm:$0xff] %v1402
      %1435 = vst [vmem:[%s273 + $0x28] sm:$0xff] %v1403
      %1436 = vst [vmem:[%s273 + $0x30] sm:$0xff] %v1404
      %1437 = vst [vmem:[%s273 + $0x38] sm:$0xff] %v1405
      %1438 = vst [vmem:[%s273 + $0x40] sm:$0xff] %v1406
      %1439 = vst [vmem:[%s273 + $0x48] sm:$0xff] %v1407
      %1440 = vst [vmem:[%s273 + $0x50] sm:$0xff] %v1408
      %1441 = vst [vmem:[%s273 + $0x58] sm:$0xff] %v1409
      %1442 = vst [vmem:[%s273 + $0x60] sm:$0xff] %v1410
      %1443 = vst [vmem:[%s273 + $0x68] sm:$0xff] %v1411
      %1444 = vst [vmem:[%s273 + $0x70] sm:$0xff] %v1412
      %1445 = vst [vmem:[%s273 + $0x78] sm:$0xff] %v1413
      %1446 = vst [vmem:[%s273 + $0x80] sm:$0xff] %v1414
      %1447 = vst [vmem:[%s273 + $0x88] sm:$0xff] %v1415
      %1448 = vst [vmem:[%s273 + $0x90] sm:$0xff] %v1416
      %1449 = vst [vmem:[%s273 + $0x98] sm:$0xff] %v1417
      %1450 = vst [vmem:[%s273 + $0xa0] sm:$0xff] %v1418
      %1451 = vst [vmem:[%s273 + $0xa8] sm:$0xff] %v1419
      %1452 = vst [vmem:[%s273 + $0xb0] sm:$0xff] %v1420
      %1453 = vst [vmem:[%s273 + $0xb8] sm:$0xff] %v1421
      %1454 = vst [vmem:[%s273 + $0xc0] sm:$0xff] %v1422
      %1455 = vst [vmem:[%s273 + $0xc8] sm:$0xff] %v1423
      %1456 = vst [vmem:[%s273 + $0xd0] sm:$0xff] %v1424
      %1457 = vst [vmem:[%s273 + $0xd8] sm:$0xff] %v1425
      %1458 = vst [vmem:[%s273 + $0xe0] sm:$0xff] %v1426
      %1459 = vst [vmem:[%s273 + $0xe8] sm:$0xff] %v1427
      %1460 = vst [vmem:[%s273 + $0xf0] sm:$0xff] %v1428
      %1461 = vst [vmem:[%s273 + $0xf8] sm:$0xff] %v1429
      %s1462 = sadd.s32 %s20, %s22
      %s1463 = smul.u32 32, %s1462
      %p1464 = scmp.lt.s32.totalorder %s1463, 63
      %s1465 = scalar_select %p1464, %s1463, 63
      %p1466 = scmp.lt.s32.totalorder %s21, 0
      %s1467 = scalar_select %p1466, %s21, 0
      %s1468 = sadd.s32 %s1467, %s1465
      %s1469 = smul.addr %s1468, 8
      %s1470 = scalar_lea.vmem %s4, %s1469
      // Predicated region
      $region37: #{basic_conv2d.1} parent=35 // pred_check
        %p1471 = pneg %p160
      $region38: #{basic_conv2d.1} parent=35 // pred_check_branch
        %1473 = sbr.rel (%p1471) target = $region40
      $region39: #{basic_conv2d.1} parent=35 // pred_region
        %s1474 = sadd.s32 %s20, %s22
        %s1475 = smul.u32 32, %s1474
      $region40: #{basic_conv2d.1} parent=35 // pred_fallthru
        _
    $region36: #{basic_conv2d.1} parent=5 // pred_fallthru
      _
    %p1476 = scmp.le.s32.totalorder 2, %s10
    // Predicated region
    $region41: #{basic_conv2d.1} parent=5 // pred_check
      %p1477 = pneg %p1476
    $region42: #{basic_conv2d.1} parent=5 // pred_check_branch
      %1479 = sbr.rel (%p1477) target = $region44
    $region43: #{basic_conv2d.1} parent=5 // pred_region
      %s1480 = ssub.s32 %s10, 2
      // Predicated region
      $region45: #{basic_conv2d.1} parent=43 // pred_check
        %p1481 = pneg %p166
      $region46: #{basic_conv2d.1} parent=43 // pred_check_branch
        %1483 = sbr.rel (%p1481) target = $region48
      $region47: #{basic_conv2d.1} parent=43 // pred_region
        %s1484 = sadd.s32 %s23, %s25
        %s1485 = smul.u32 32, %s1484
        %p1486 = scmp.lt.s32.totalorder %s1485, 63
        %s1487 = scalar_select %p1486, %s1485, 63
        %p1488 = scmp.lt.s32.totalorder %s24, 0
        %s1489 = scalar_select %p1488, %s24, 0
        %s1490 = sadd.s32 %s1489, %s1487
        %s1491 = smul.addr %s1490, 8
        %s1492 = scalar_lea.vmem %s4, %s1491
      $region48: #{basic_conv2d.1} parent=43 // pred_fallthru
        _
    $region44: #{basic_conv2d.1} parent=5 // pred_fallthru
      _
  $region6: #{basic_conv2d.1} parent=0 // loop_footer
    %s14 = sadd.s32 1, %s10
  $region7: #{basic_conv2d.1} parent=0 // loop_footer_branch
    %9 = sbr.rel target = $region3
  $region8: #{basic_conv2d.1} parent=0 // loop_exit
    _

</llo_original>
